<compile_context>
chip_gen: v5e
topology: v5e:2x2
jax: 0.10.0
libtpu: 0.0.40
codegen_flags: <defaults>
</compile_context>

<pallas_src>
import functools

import jax
import jax.numpy as jnp
from jax.experimental import pallas as pl
from jax.experimental.pallas import tpu as pltpu

EPS = 1e-5
KSIZE = 3
PAD = 1


def _round_up(x, m):
    return ((x + m - 1) // m) * m


# ---------------------------------------------------------------------------
# Fused kernel: conv1(3x3, s0) + bn1 + relu -> conv2(3x3, 1) + bn2
#               + 1x1 shortcut(s0) + bn  -> add -> relu
# One grid step processes one batch image; out1 stays resident in VMEM.
# ---------------------------------------------------------------------------
def _fused_block_kernel(x_ref, w1_ref, b1_ref, w2_ref, we_ref, bo_ref,
                        o_ref, o1_ref, *, s0, ho, wo, cin, cout_p):
    # x_ref : (s0, s0, Hph, Wph, Cin)  bf16  pre-padded, phase-split input
    # w1_ref: (9, Cin, Cout_p)         bf16  conv1 weights, bn1 folded
    # b1_ref: (1, Cout_p)              f32   conv1 bias,    bn1 folded
    # w2_ref: (9, Cout_p, Cout_p)      bf16  conv2 weights, bn2 folded
    # we_ref: (Cin, Cout_p)            bf16  1x1 shortcut,  bn  folded
    # bo_ref: (1, Cout_p)              f32   bias2 + bias_extra
    # o_ref : (Ho, Wo, Cout_p)         f32   output block (lane-dense, padded C)
    # o1_ref: (Ho+2, Wo+2, Cout_p)     f32   VMEM scratch: out1 with zero halo
    m = ho * wo

    # ---- conv1 (stride s0): 9 accumulated tap matmuls, no im2col in HBM ----
    acc = jnp.zeros((m, cout_p), jnp.float32)
    for ky in range(KSIZE):
        for kx in range(KSIZE):
            py, dy = ky % s0, ky // s0
            px, dx = kx % s0, kx // s0
            xt = x_ref[py, px, pl.ds(dy, ho), pl.ds(dx, wo), :]
            acc = acc + jnp.dot(xt.reshape(m, cin), w1_ref[ky * KSIZE + kx],
                                preferred_element_type=jnp.float32)
    out1 = jnp.maximum(acc + b1_ref[...], 0.0)        # bn1 folded, f32 epilogue

    # out1 (+ zero halo for pad=1) never leaves VMEM: no HBM round trip.
    o1_ref[...] = jnp.zeros_like(o1_ref)
    o1_ref[pl.ds(PAD, ho), pl.ds(PAD, wo), :] = out1.reshape(ho, wo, cout_p)

    # ---- conv2 (stride 1): 9 accumulated tap matmuls fed from VMEM out1 ----
    acc = jnp.zeros((m, cout_p), jnp.float32)
    for ky in range(KSIZE):
        for kx in range(KSIZE):
            xt = o1_ref[pl.ds(ky, ho), pl.ds(kx, wo), :].astype(jnp.bfloat16)
            acc = acc + jnp.dot(xt.reshape(m, cout_p), w2_ref[ky * KSIZE + kx],
                                preferred_element_type=jnp.float32)

    # ---- 1x1 shortcut conv (stride s0), same accumulator, same input ref ----
    pe = PAD % s0
    de = (PAD - pe) // s0
    xs = x_ref[pe, pe, pl.ds(de, ho), pl.ds(de, wo), :]
    acc = acc + jnp.dot(xs.reshape(m, cin), we_ref[...],
                        preferred_element_type=jnp.float32)

    # (bias2 + bias_extra) + relu; Cout_p % 128 == 0 -> lane-dense stores.
    y = jnp.maximum(acc + bo_ref[...], 0.0)
    o_ref[...] = y.reshape(ho, wo, cout_p).astype(o_ref.dtype)


# ---------------------------------------------------------------------------
# Hoisted weight prep (done once): fold BN, pad Cout to 128, cast to bf16.
# ---------------------------------------------------------------------------
def fold_conv_bn(w_oihw, conv_bias, gamma, beta, mean, var, cin_p, cout_p):
    co, ci, kh, kw = w_oihw.shape
    scale = gamma / jnp.sqrt(var + EPS)                                # (co,)
    wm = jnp.transpose(w_oihw, (2, 3, 1, 0)).reshape(kh * kw, ci, co)
    wm = wm * scale[None, None, :]
    bias = (conv_bias - mean) * scale + beta
    wm = jnp.pad(wm, ((0, 0), (0, cin_p - ci), (0, cout_p - co)))
    bias = jnp.pad(bias, (0, cout_p - co))
    return wm.astype(jnp.bfloat16), bias.reshape(1, -1).astype(jnp.float32)


def prepare_block_params(params):
    w1, b1, g1, be1, m1, v1 = params["conv1"]
    w2, b2, g2, be2, m2, v2 = params["conv2"]
    we, bbe, ge, bee, me, ve = params["extra"]
    cout, cin = w1.shape[0], w1.shape[1]
    cout_p = _round_up(cout, 128)

    w1m, b1v = fold_conv_bn(w1, b1, g1, be1, m1, v1, cin, cout_p)
    w2m, b2v = fold_conv_bn(w2, b2, g2, be2, m2, v2, cout_p, cout_p)
    wem, bev = fold_conv_bn(we, bbe, ge, bee, me, ve, cin, cout_p)
    return {
        "w1": w1m,            # (9, Cin, Cout_p)     bf16
        "b1": b1v,            # (1, Cout_p)          f32
        "w2": w2m,            # (9, Cout_p, Cout_p)  bf16
        "we": wem[0],         # (Cin, Cout_p)        bf16
        "bo": b2v + bev,      # (1, Cout_p)          f32
    }


def _phase_split(x_nhwc, s0, ho, wo):
    """Pre-padded, stride-phase-split copy of x (~1x input bytes, not 9x)."""
    n, h, w, c = x_nhwc.shape
    xp = jnp.pad(x_nhwc, ((0, 0), (PAD, PAD), (PAD, PAD), (0, 0)))
    hph = ho + (KSIZE - 1) // s0
    wph = wo + (KSIZE - 1) // s0
    x_ph = jnp.zeros((n, s0, s0, hph, wph, c), x_nhwc.dtype)
    for py in range(s0):
        for px in range(s0):
            sl = xp[:, py::s0, px::s0, :][:, :hph, :wph, :]
            x_ph = x_ph.at[:, py, px, :sl.shape[1], :sl.shape[2], :].set(sl)
    return x_ph


def restnet_down_block(x_nchw, prep, *, stride, out_channels):
    s0, s1 = stride
    if s1 != 1:
        raise ValueError("residual add requires conv2 stride == 1")

    n, cin, h, w = x_nchw.shape
    cout_p = prep["w1"].shape[-1]
    ho = (h + 2 * PAD - KSIZE) // s0 + 1
    wo = (w + 2 * PAD - KSIZE) // s0 + 1

    # NCHW -> NHWC, bf16 before the pad/phase copies (half-width traffic).
    x = jnp.transpose(x_nchw, (0, 2, 3, 1)).astype(jnp.bfloat16)
    x_ph = _phase_split(x, s0, ho, wo)
    hph, wph = x_ph.shape[3], x_ph.shape[4]

    kernel = functools.partial(_fused_block_kernel, s0=s0, ho=ho, wo=wo,
                               cin=cin, cout_p=cout_p)

    out = pl.pallas_call(
        kernel,
        out_shape=jax.ShapeDtypeStruct((n, ho, wo, cout_p), jnp.float32),
        grid_spec=pltpu.PrefetchScalarGridSpec(
            num_scalar_prefetch=0,
            grid=(n,),
            in_specs=[
                pl.BlockSpec((None, s0, s0, hph, wph, cin),
                             lambda b: (b, 0, 0, 0, 0, 0)),
                # Weight / bias block indices are constant in b -> resident,
                # no per-step re-DMA.
                pl.BlockSpec((KSIZE * KSIZE, cin, cout_p), lambda b: (0, 0, 0)),
                pl.BlockSpec((1, cout_p), lambda b: (0, 0)),
                pl.BlockSpec((KSIZE * KSIZE, cout_p, cout_p),
                             lambda b: (0, 0, 0)),
                pl.BlockSpec((cin, cout_p), lambda b: (0, 0)),
                pl.BlockSpec((1, cout_p), lambda b: (0, 0)),
            ],
            out_specs=pl.BlockSpec((None, ho, wo, cout_p),
                                   lambda b: (b, 0, 0, 0)),
            scratch_shapes=[
                pltpu.VMEM((ho + 2 * PAD, wo + 2 * PAD, cout_p), jnp.float32),
            ],
        ),
        compiler_params=pltpu.CompilerParams(
            # Batch axis shards across v7x's two TensorCores; harmless on
            # single-TC v5e/v6e.
            dimension_semantics=("parallel",),
        ),
    )(x_ph, prep["w1"], prep["b1"], prep["w2"], prep["we"], prep["bo"])

    # Slice the channel pad exactly once, at the very end; back to NCHW.
    out = out[..., :out_channels]
    return jnp.transpose(out, (0, 3, 1, 2))


# ---------------------------------------------------------------------------
# Pure-JAX reference (XLA conv, f32) for correctness check.
# ---------------------------------------------------------------------------
def ref_forward(x, params, stride):
    def conv(x, w, b, s, pad):
        y = jax.lax.conv_general_dilated(
            x, w, (s, s), [(pad, pad), (pad, pad)],
            dimension_numbers=("NCHW", "OIHW", "NCHW"))
        return y + b[None, :, None, None]

    def bn(x, g, b, m, v):
        return (g[None, :, None, None] * (x - m[None, :, None, None])
                / jnp.sqrt(v[None, :, None, None] + EPS) + b[None, :, None, None])

    s0, s1 = stride
    w1, b1, g1, be1, m1, v1 = params["conv1"]
    w2, b2, g2, be2, m2, v2 = params["conv2"]
    we, bbe, ge, bee, me, ve = params["extra"]

    extra_x = bn(conv(x, we, bbe, s0, 0), ge, bee, me, ve)
    out = jax.nn.relu(bn(conv(x, w1, b1, s0, 1), g1, be1, m1, v1))
    out = bn(conv(out, w2, b2, s1, 1), g2, be2, m2, v2)
    return jax.nn.relu(extra_x + out)


# ---------------------------------------------------------------------------
def make_params(key, cin, cout):
    ks = jax.random.split(key, 16)

    def bn_params(k, c):
        k1, k2, k3, k4 = jax.random.split(k, 4)
        gamma = 1.0 + 0.1 * jax.random.normal(k1, (c,), jnp.float32)
        beta = 0.1 * jax.random.normal(k2, (c,), jnp.float32)
        mean = 0.1 * jax.random.normal(k3, (c,), jnp.float32)
        var = 1.0 + 0.1 * jax.random.uniform(k4, (c,), jnp.float32)
        return gamma, beta, mean, var

    w1 = 0.1 * jax.random.normal(ks[0], (cout, cin, 3, 3), jnp.float32)
    b1 = 0.05 * jax.random.normal(ks[1], (cout,), jnp.float32)
    w2 = 0.1 * jax.random.normal(ks[2], (cout, cout, 3, 3), jnp.float32)
    b2 = 0.05 * jax.random.normal(ks[3], (cout,), jnp.float32)
    we = 0.1 * jax.random.normal(ks[4], (cout, cin, 1, 1), jnp.float32)
    bbe = 0.05 * jax.random.normal(ks[5], (cout,), jnp.float32)

    return {
        "conv1": (w1, b1, *bn_params(ks[6], cout)),
        "conv2": (w2, b2, *bn_params(ks[7], cout)),
        "extra": (we, bbe, *bn_params(ks[8], cout)),
    }


if __name__ == "__main__":
    key = jax.random.PRNGKey(0)
    kx, kp = jax.random.split(key)

    N, Cin, Cout, H, W = 2, 4, 8, 16, 16
    stride = (2, 1)                      # classic ResNet down block

    x = jax.random.normal(kx, (N, Cin, H, W), jnp.float32)   # NCHW like PyTorch
    params = make_params(kp, Cin, Cout)

    # Weight prep (BN fold + channel pad + bf16 cast) hoisted out of the
    # forward pass: done once.
    prep = prepare_block_params(params)

    forward = jax.jit(restnet_down_block,
                      static_argnames=("stride", "out_channels"))
    out = jax.block_until_ready(forward(x, prep, stride=stride,
                                        out_channels=Cout))

    ref = jax.block_until_ready(ref_forward(x, params, stride))
    assert out.shape == ref.shape == (N, Cout, H // stride[0], W // stride[0])
    # bf16 MXU operands -> loosened tolerance vs. the f32 XLA reference.
    err = float(jnp.max(jnp.abs(out - ref)))
    assert jnp.allclose(out, ref, atol=3e-2, rtol=3e-2), err

    print("KERNEL_OK")
</pallas_src>

<mosaic_0001>
module attributes {stable_mosaic.version = 11 : i64} {
  func.func @_fused_block_kernel(%arg0: i32, %arg1: memref<1x2x2x9x9x4xbf16, #tpu.memory_space<vmem>>, %arg2: memref<9x4x128xbf16, #tpu.memory_space<vmem>>, %arg3: memref<1x128xf32, #tpu.memory_space<vmem>>, %arg4: memref<9x128x128xbf16, #tpu.memory_space<vmem>>, %arg5: memref<4x128xbf16, #tpu.memory_space<vmem>>, %arg6: memref<1x128xf32, #tpu.memory_space<vmem>>, %arg7: memref<1x8x8x128xf32, #tpu.memory_space<vmem>>, %arg8: memref<10x10x128xf32, #tpu.memory_space<vmem>>) attributes {dimension_semantics = [#tpu.dimension_semantics<parallel>], iteration_bounds = array<i64: 2>, scalar_prefetch = 0 : i64, scratch_operands = 1 : i64, tpu.core_type = #tpu.core_type<tc>, window_params = [{transform_indices = @transform_0, window_bounds = array<i64: 1, 2, 2, 9, 9, 4>}, {pipeline_mode = #tpu.pipeline_mode<synchronous>, transform_indices = @transform_1, window_bounds = array<i64: 9, 4, 128>}, {pipeline_mode = #tpu.pipeline_mode<synchronous>, transform_indices = @transform_2, window_bounds = array<i64: 1, 128>}, {pipeline_mode = #tpu.pipeline_mode<synchronous>, transform_indices = @transform_3, window_bounds = array<i64: 9, 128, 128>}, {pipeline_mode = #tpu.pipeline_mode<synchronous>, transform_indices = @transform_4, window_bounds = array<i64: 4, 128>}, {pipeline_mode = #tpu.pipeline_mode<synchronous>, transform_indices = @transform_5, window_bounds = array<i64: 1, 128>}, {transform_indices = @transform_6, window_bounds = array<i64: 1, 8, 8, 128>}]} {
    %cst = arith.constant 0.000000e+00 : f32
    %0 = vector.broadcast %cst : f32 to vector<64x128xf32>
    %c0 = arith.constant 0 : index
    %c0_0 = arith.constant 0 : index
    %c0_1 = arith.constant 0 : index
    %c0_2 = arith.constant 0 : index
    %c0_3 = arith.constant 0 : index
    %c0_4 = arith.constant 0 : index
    %1 = vector.load %arg1[%c0, %c0_0, %c0_1, %c0_2, %c0_3, %c0_4] : memref<1x2x2x9x9x4xbf16, #tpu.memory_space<vmem>>, vector<1x1x1x8x8x4xbf16>
    %2 = vector.shape_cast %1 : vector<1x1x1x8x8x4xbf16> to vector<8x8x4xbf16>
    %3 = vector.shape_cast %2 : vector<8x8x4xbf16> to vector<64x4xbf16>
    %c0_5 = arith.constant 0 : index
    %c0_6 = arith.constant 0 : index
    %c0_7 = arith.constant 0 : index
    %4 = vector.load %arg2[%c0_5, %c0_6, %c0_7] : memref<9x4x128xbf16, #tpu.memory_space<vmem>>, vector<1x4x128xbf16>
    %5 = vector.shape_cast %4 : vector<1x4x128xbf16> to vector<4x128xbf16>
    %cst_8 = arith.constant dense<0.000000e+00> : vector<64x128xf32>
    %6 = tpu.matmul %3, %5, %cst_8 {dimension_numbers = #tpu.dot_dimension_numbers<[1], [0], [0], [1], [0, 0, 1, 1], [], []>} : vector<64x4xbf16>, vector<4x128xbf16>, vector<64x128xf32> -> vector<64x128xf32>
    %7 = arith.addf %0, %6 : vector<64x128xf32>
    %c0_9 = arith.constant 0 : index
    %c0_10 = arith.constant 0 : index
    %c1 = arith.constant 1 : index
    %c0_11 = arith.constant 0 : index
    %c0_12 = arith.constant 0 : index
    %c0_13 = arith.constant 0 : index
    %8 = vector.load %arg1[%c0_9, %c0_10, %c1, %c0_11, %c0_12, %c0_13] : memref<1x2x2x9x9x4xbf16, #tpu.memory_space<vmem>>, vector<1x1x1x8x8x4xbf16>
    %9 = vector.shape_cast %8 : vector<1x1x1x8x8x4xbf16> to vector<8x8x4xbf16>
    %10 = vector.shape_cast %9 : vector<8x8x4xbf16> to vector<64x4xbf16>
    %c1_14 = arith.constant 1 : index
    %c0_15 = arith.constant 0 : index
    %c0_16 = arith.constant 0 : index
    %11 = vector.load %arg2[%c1_14, %c0_15, %c0_16] : memref<9x4x128xbf16, #tpu.memory_space<vmem>>, vector<1x4x128xbf16>
    %12 = vector.shape_cast %11 : vector<1x4x128xbf16> to vector<4x128xbf16>
    %cst_17 = arith.constant dense<0.000000e+00> : vector<64x128xf32>
    %13 = tpu.matmul %10, %12, %cst_17 {dimension_numbers = #tpu.dot_dimension_numbers<[1], [0], [0], [1], [0, 0, 1, 1], [], []>} : vector<64x4xbf16>, vector<4x128xbf16>, vector<64x128xf32> -> vector<64x128xf32>
    %14 = arith.addf %7, %13 : vector<64x128xf32>
    %c0_18 = arith.constant 0 : index
    %c0_19 = arith.constant 0 : index
    %c0_20 = arith.constant 0 : index
    %c0_21 = arith.constant 0 : index
    %c1_22 = arith.constant 1 : index
    %c0_23 = arith.constant 0 : index
    %15 = vector.load %arg1[%c0_18, %c0_19, %c0_20, %c0_21, %c1_22, %c0_23] : memref<1x2x2x9x9x4xbf16, #tpu.memory_space<vmem>>, vector<1x1x1x8x8x4xbf16>
    %16 = vector.shape_cast %15 : vector<1x1x1x8x8x4xbf16> to vector<8x8x4xbf16>
    %17 = vector.shape_cast %16 : vector<8x8x4xbf16> to vector<64x4xbf16>
    %c2 = arith.constant 2 : index
    %c0_24 = arith.constant 0 : index
    %c0_25 = arith.constant 0 : index
    %18 = vector.load %arg2[%c2, %c0_24, %c0_25] : memref<9x4x128xbf16, #tpu.memory_space<vmem>>, vector<1x4x128xbf16>
    %19 = vector.shape_cast %18 : vector<1x4x128xbf16> to vector<4x128xbf16>
    %cst_26 = arith.constant dense<0.000000e+00> : vector<64x128xf32>
    %20 = tpu.matmul %17, %19, %cst_26 {dimension_numbers = #tpu.dot_dimension_numbers<[1], [0], [0], [1], [0, 0, 1, 1], [], []>} : vector<64x4xbf16>, vector<4x128xbf16>, vector<64x128xf32> -> vector<64x128xf32>
    %21 = arith.addf %14, %20 : vector<64x128xf32>
    %c0_27 = arith.constant 0 : index
    %c1_28 = arith.constant 1 : index
    %c0_29 = arith.constant 0 : index
    %c0_30 = arith.constant 0 : index
    %c0_31 = arith.constant 0 : index
    %c0_32 = arith.constant 0 : index
    %22 = vector.load %arg1[%c0_27, %c1_28, %c0_29, %c0_30, %c0_31, %c0_32] : memref<1x2x2x9x9x4xbf16, #tpu.memory_space<vmem>>, vector<1x1x1x8x8x4xbf16>
    %23 = vector.shape_cast %22 : vector<1x1x1x8x8x4xbf16> to vector<8x8x4xbf16>
    %24 = vector.shape_cast %23 : vector<8x8x4xbf16> to vector<64x4xbf16>
    %c3 = arith.constant 3 : index
    %c0_33 = arith.constant 0 : index
    %c0_34 = arith.constant 0 : index
    %25 = vector.load %arg2[%c3, %c0_33, %c0_34] : memref<9x4x128xbf16, #tpu.memory_space<vmem>>, vector<1x4x128xbf16>
    %26 = vector.shape_cast %25 : vector<1x4x128xbf16> to vector<4x128xbf16>
    %cst_35 = arith.constant dense<0.000000e+00> : vector<64x128xf32>
    %27 = tpu.matmul %24, %26, %cst_35 {dimension_numbers = #tpu.dot_dimension_numbers<[1], [0], [0], [1], [0, 0, 1, 1], [], []>} : vector<64x4xbf16>, vector<4x128xbf16>, vector<64x128xf32> -> vector<64x128xf32>
    %28 = arith.addf %21, %27 : vector<64x128xf32>
    %c0_36 = arith.constant 0 : index
    %c1_37 = arith.constant 1 : index
    %c1_38 = arith.constant 1 : index
    %c0_39 = arith.constant 0 : index
    %c0_40 = arith.constant 0 : index
    %c0_41 = arith.constant 0 : index
    %29 = vector.load %arg1[%c0_36, %c1_37, %c1_38, %c0_39, %c0_40, %c0_41] : memref<1x2x2x9x9x4xbf16, #tpu.memory_space<vmem>>, vector<1x1x1x8x8x4xbf16>
    %30 = vector.shape_cast %29 : vector<1x1x1x8x8x4xbf16> to vector<8x8x4xbf16>
    %31 = vector.shape_cast %30 : vector<8x8x4xbf16> to vector<64x4xbf16>
    %c4 = arith.constant 4 : index
    %c0_42 = arith.constant 0 : index
    %c0_43 = arith.constant 0 : index
    %32 = vector.load %arg2[%c4, %c0_42, %c0_43] : memref<9x4x128xbf16, #tpu.memory_space<vmem>>, vector<1x4x128xbf16>
    %33 = vector.shape_cast %32 : vector<1x4x128xbf16> to vector<4x128xbf16>
    %cst_44 = arith.constant dense<0.000000e+00> : vector<64x128xf32>
    %34 = tpu.matmul %31, %33, %cst_44 {dimension_numbers = #tpu.dot_dimension_numbers<[1], [0], [0], [1], [0, 0, 1, 1], [], []>} : vector<64x4xbf16>, vector<4x128xbf16>, vector<64x128xf32> -> vector<64x128xf32>
    %35 = arith.addf %28, %34 : vector<64x128xf32>
    %c0_45 = arith.constant 0 : index
    %c1_46 = arith.constant 1 : index
    %c0_47 = arith.constant 0 : index
    %c0_48 = arith.constant 0 : index
    %c1_49 = arith.constant 1 : index
    %c0_50 = arith.constant 0 : index
    %36 = vector.load %arg1[%c0_45, %c1_46, %c0_47, %c0_48, %c1_49, %c0_50] : memref<1x2x2x9x9x4xbf16, #tpu.memory_space<vmem>>, vector<1x1x1x8x8x4xbf16>
    %37 = vector.shape_cast %36 : vector<1x1x1x8x8x4xbf16> to vector<8x8x4xbf16>
    %38 = vector.shape_cast %37 : vector<8x8x4xbf16> to vector<64x4xbf16>
    %c5 = arith.constant 5 : index
    %c0_51 = arith.constant 0 : index
    %c0_52 = arith.constant 0 : index
    %39 = vector.load %arg2[%c5, %c0_51, %c0_52] : memref<9x4x128xbf16, #tpu.memory_space<vmem>>, vector<1x4x128xbf16>
    %40 = vector.shape_cast %39 : vector<1x4x128xbf16> to vector<4x128xbf16>
    %cst_53 = arith.constant dense<0.000000e+00> : vector<64x128xf32>
    %41 = tpu.matmul %38, %40, %cst_53 {dimension_numbers = #tpu.dot_dimension_numbers<[1], [0], [0], [1], [0, 0, 1, 1], [], []>} : vector<64x4xbf16>, vector<4x128xbf16>, vector<64x128xf32> -> vector<64x128xf32>
    %42 = arith.addf %35, %41 : vector<64x128xf32>
    %c0_54 = arith.constant 0 : index
    %c0_55 = arith.constant 0 : index
    %c0_56 = arith.constant 0 : index
    %c1_57 = arith.constant 1 : index
    %c0_58 = arith.constant 0 : index
    %c0_59 = arith.constant 0 : index
    %43 = vector.load %arg1[%c0_54, %c0_55, %c0_56, %c1_57, %c0_58, %c0_59] : memref<1x2x2x9x9x4xbf16, #tpu.memory_space<vmem>>, vector<1x1x1x8x8x4xbf16>
    %44 = vector.shape_cast %43 : vector<1x1x1x8x8x4xbf16> to vector<8x8x4xbf16>
    %45 = vector.shape_cast %44 : vector<8x8x4xbf16> to vector<64x4xbf16>
    %c6 = arith.constant 6 : index
    %c0_60 = arith.constant 0 : index
    %c0_61 = arith.constant 0 : index
    %46 = vector.load %arg2[%c6, %c0_60, %c0_61] : memref<9x4x128xbf16, #tpu.memory_space<vmem>>, vector<1x4x128xbf16>
    %47 = vector.shape_cast %46 : vector<1x4x128xbf16> to vector<4x128xbf16>
    %cst_62 = arith.constant dense<0.000000e+00> : vector<64x128xf32>
    %48 = tpu.matmul %45, %47, %cst_62 {dimension_numbers = #tpu.dot_dimension_numbers<[1], [0], [0], [1], [0, 0, 1, 1], [], []>} : vector<64x4xbf16>, vector<4x128xbf16>, vector<64x128xf32> -> vector<64x128xf32>
    %49 = arith.addf %42, %48 : vector<64x128xf32>
    %c0_63 = arith.constant 0 : index
    %c0_64 = arith.constant 0 : index
    %c1_65 = arith.constant 1 : index
    %c1_66 = arith.constant 1 : index
    %c0_67 = arith.constant 0 : index
    %c0_68 = arith.constant 0 : index
    %50 = vector.load %arg1[%c0_63, %c0_64, %c1_65, %c1_66, %c0_67, %c0_68] : memref<1x2x2x9x9x4xbf16, #tpu.memory_space<vmem>>, vector<1x1x1x8x8x4xbf16>
    %51 = vector.shape_cast %50 : vector<1x1x1x8x8x4xbf16> to vector<8x8x4xbf16>
    %52 = vector.shape_cast %51 : vector<8x8x4xbf16> to vector<64x4xbf16>
    %c7 = arith.constant 7 : index
    %c0_69 = arith.constant 0 : index
    %c0_70 = arith.constant 0 : index
    %53 = vector.load %arg2[%c7, %c0_69, %c0_70] : memref<9x4x128xbf16, #tpu.memory_space<vmem>>, vector<1x4x128xbf16>
    %54 = vector.shape_cast %53 : vector<1x4x128xbf16> to vector<4x128xbf16>
    %cst_71 = arith.constant dense<0.000000e+00> : vector<64x128xf32>
    %55 = tpu.matmul %52, %54, %cst_71 {dimension_numbers = #tpu.dot_dimension_numbers<[1], [0], [0], [1], [0, 0, 1, 1], [], []>} : vector<64x4xbf16>, vector<4x128xbf16>, vector<64x128xf32> -> vector<64x128xf32>
    %56 = arith.addf %49, %55 : vector<64x128xf32>
    %c0_72 = arith.constant 0 : index
    %c0_73 = arith.constant 0 : index
    %c0_74 = arith.constant 0 : index
    %c1_75 = arith.constant 1 : index
    %c1_76 = arith.constant 1 : index
    %c0_77 = arith.constant 0 : index
    %57 = vector.load %arg1[%c0_72, %c0_73, %c0_74, %c1_75, %c1_76, %c0_77] : memref<1x2x2x9x9x4xbf16, #tpu.memory_space<vmem>>, vector<1x1x1x8x8x4xbf16>
    %58 = vector.shape_cast %57 : vector<1x1x1x8x8x4xbf16> to vector<8x8x4xbf16>
    %59 = vector.shape_cast %58 : vector<8x8x4xbf16> to vector<64x4xbf16>
    %c8 = arith.constant 8 : index
    %c0_78 = arith.constant 0 : index
    %c0_79 = arith.constant 0 : index
    %60 = vector.load %arg2[%c8, %c0_78, %c0_79] : memref<9x4x128xbf16, #tpu.memory_space<vmem>>, vector<1x4x128xbf16>
    %61 = vector.shape_cast %60 : vector<1x4x128xbf16> to vector<4x128xbf16>
    %cst_80 = arith.constant dense<0.000000e+00> : vector<64x128xf32>
    %62 = tpu.matmul %59, %61, %cst_80 {dimension_numbers = #tpu.dot_dimension_numbers<[1], [0], [0], [1], [0, 0, 1, 1], [], []>} : vector<64x4xbf16>, vector<4x128xbf16>, vector<64x128xf32> -> vector<64x128xf32>
    %63 = arith.addf %56, %62 : vector<64x128xf32>
    %c0_81 = arith.constant 0 : index
    %c0_82 = arith.constant 0 : index
    %64 = vector.load %arg3[%c0_81, %c0_82] : memref<1x128xf32, #tpu.memory_space<vmem>>, vector<1x128xf32>
    %65 = vector.broadcast %64 : vector<1x128xf32> to vector<64x128xf32>
    %66 = arith.addf %63, %65 : vector<64x128xf32>
    %cst_83 = arith.constant 0.000000e+00 : f32
    %67 = vector.broadcast %cst_83 : f32 to vector<64x128xf32>
    %68 = arith.maximumf %66, %67 : vector<64x128xf32>
    %cst_84 = arith.constant 0.000000e+00 : f32
    %69 = vector.broadcast %cst_84 : f32 to vector<10x10x128xf32>
    %c0_85 = arith.constant 0 : index
    %c0_86 = arith.constant 0 : index
    %c0_87 = arith.constant 0 : index
    %70 = vector.load %arg8[%c0_85, %c0_86, %c0_87] : memref<10x10x128xf32, #tpu.memory_space<vmem>>, vector<10x10x128xf32>
    tpu.vector_store %arg8[%c0_85, %c0_86, %c0_87], %69 {strides = array<i32>} : memref<10x10x128xf32, #tpu.memory_space<vmem>>, vector<10x10x128xf32>,
    %71 = vector.shape_cast %68 : vector<64x128xf32> to vector<8x8x128xf32>
    %c1_88 = arith.constant 1 : index
    %c1_89 = arith.constant 1 : index
    %c0_90 = arith.constant 0 : index
    %72 = vector.load %arg8[%c1_88, %c1_89, %c0_90] : memref<10x10x128xf32, #tpu.memory_space<vmem>>, vector<8x8x128xf32>
    tpu.vector_store %arg8[%c1_88, %c1_89, %c0_90], %71 {strides = array<i32>} : memref<10x10x128xf32, #tpu.memory_space<vmem>>, vector<8x8x128xf32>,
    %cst_91 = arith.constant 0.000000e+00 : f32
    %73 = vector.broadcast %cst_91 : f32 to vector<64x128xf32>
    %c0_92 = arith.constant 0 : index
    %c0_93 = arith.constant 0 : index
    %c0_94 = arith.constant 0 : index
    %74 = vector.load %arg8[%c0_92, %c0_93, %c0_94] : memref<10x10x128xf32, #tpu.memory_space<vmem>>, vector<8x8x128xf32>
    %75 = arith.truncf %74 : vector<8x8x128xf32> to vector<8x8x128xbf16>
    %76 = vector.shape_cast %75 : vector<8x8x128xbf16> to vector<64x128xbf16>
    %c0_95 = arith.constant 0 : index
    %c0_96 = arith.constant 0 : index
    %c0_97 = arith.constant 0 : index
    %77 = vector.load %arg4[%c0_95, %c0_96, %c0_97] : memref<9x128x128xbf16, #tpu.memory_space<vmem>>, vector<1x128x128xbf16>
    %78 = vector.shape_cast %77 : vector<1x128x128xbf16> to vector<128x128xbf16>
    %cst_98 = arith.constant dense<0.000000e+00> : vector<64x128xf32>
    %79 = tpu.matmul %76, %78, %cst_98 {dimension_numbers = #tpu.dot_dimension_numbers<[1], [0], [0], [1], [0, 0, 1, 1], [], []>} : vector<64x128xbf16>, vector<128x128xbf16>, vector<64x128xf32> -> vector<64x128xf32>
    %80 = arith.addf %73, %79 : vector<64x128xf32>
    %c0_99 = arith.constant 0 : index
    %c1_100 = arith.constant 1 : index
    %c0_101 = arith.constant 0 : index
    %81 = vector.load %arg8[%c0_99, %c1_100, %c0_101] : memref<10x10x128xf32, #tpu.memory_space<vmem>>, vector<8x8x128xf32>
    %82 = arith.truncf %81 : vector<8x8x128xf32> to vector<8x8x128xbf16>
    %83 = vector.shape_cast %82 : vector<8x8x128xbf16> to vector<64x128xbf16>
    %c1_102 = arith.constant 1 : index
    %c0_103 = arith.constant 0 : index
    %c0_104 = arith.constant 0 : index
    %84 = vector.load %arg4[%c1_102, %c0_103, %c0_104] : memref<9x128x128xbf16, #tpu.memory_space<vmem>>, vector<1x128x128xbf16>
    %85 = vector.shape_cast %84 : vector<1x128x128xbf16> to vector<128x128xbf16>
    %cst_105 = arith.constant dense<0.000000e+00> : vector<64x128xf32>
    %86 = tpu.matmul %83, %85, %cst_105 {dimension_numbers = #tpu.dot_dimension_numbers<[1], [0], [0], [1], [0, 0, 1, 1], [], []>} : vector<64x128xbf16>, vector<128x128xbf16>, vector<64x128xf32> -> vector<64x128xf32>
    %87 = arith.addf %80, %86 : vector<64x128xf32>
    %c0_106 = arith.constant 0 : index
    %c2_107 = arith.constant 2 : index
    %c0_108 = arith.constant 0 : index
    %88 = vector.load %arg8[%c0_106, %c2_107, %c0_108] : memref<10x10x128xf32, #tpu.memory_space<vmem>>, vector<8x8x128xf32>
    %89 = arith.truncf %88 : vector<8x8x128xf32> to vector<8x8x128xbf16>
    %90 = vector.shape_cast %89 : vector<8x8x128xbf16> to vector<64x128xbf16>
    %c2_109 = arith.constant 2 : index
    %c0_110 = arith.constant 0 : index
    %c0_111 = arith.constant 0 : index
    %91 = vector.load %arg4[%c2_109, %c0_110, %c0_111] : memref<9x128x128xbf16, #tpu.memory_space<vmem>>, vector<1x128x128xbf16>
    %92 = vector.shape_cast %91 : vector<1x128x128xbf16> to vector<128x128xbf16>
    %cst_112 = arith.constant dense<0.000000e+00> : vector<64x128xf32>
    %93 = tpu.matmul %90, %92, %cst_112 {dimension_numbers = #tpu.dot_dimension_numbers<[1], [0], [0], [1], [0, 0, 1, 1], [], []>} : vector<64x128xbf16>, vector<128x128xbf16>, vector<64x128xf32> -> vector<64x128xf32>
    %94 = arith.addf %87, %93 : vector<64x128xf32>
    %c1_113 = arith.constant 1 : index
    %c0_114 = arith.constant 0 : index
    %c0_115 = arith.constant 0 : index
    %95 = vector.load %arg8[%c1_113, %c0_114, %c0_115] : memref<10x10x128xf32, #tpu.memory_space<vmem>>, vector<8x8x128xf32>
    %96 = arith.truncf %95 : vector<8x8x128xf32> to vector<8x8x128xbf16>
    %97 = vector.shape_cast %96 : vector<8x8x128xbf16> to vector<64x128xbf16>
    %c3_116 = arith.constant 3 : index
    %c0_117 = arith.constant 0 : index
    %c0_118 = arith.constant 0 : index
    %98 = vector.load %arg4[%c3_116, %c0_117, %c0_118] : memref<9x128x128xbf16, #tpu.memory_space<vmem>>, vector<1x128x128xbf16>
    %99 = vector.shape_cast %98 : vector<1x128x128xbf16> to vector<128x128xbf16>
    %cst_119 = arith.constant dense<0.000000e+00> : vector<64x128xf32>
    %100 = tpu.matmul %97, %99, %cst_119 {dimension_numbers = #tpu.dot_dimension_numbers<[1], [0], [0], [1], [0, 0, 1, 1], [], []>} : vector<64x128xbf16>, vector<128x128xbf16>, vector<64x128xf32> -> vector<64x128xf32>
    %101 = arith.addf %94, %100 : vector<64x128xf32>
    %c1_120 = arith.constant 1 : index
    %c1_121 = arith.constant 1 : index
    %c0_122 = arith.constant 0 : index
    %102 = vector.load %arg8[%c1_120, %c1_121, %c0_122] : memref<10x10x128xf32, #tpu.memory_space<vmem>>, vector<8x8x128xf32>
    %103 = arith.truncf %102 : vector<8x8x128xf32> to vector<8x8x128xbf16>
    %104 = vector.shape_cast %103 : vector<8x8x128xbf16> to vector<64x128xbf16>
    %c4_123 = arith.constant 4 : index
    %c0_124 = arith.constant 0 : index
    %c0_125 = arith.constant 0 : index
    %105 = vector.load %arg4[%c4_123, %c0_124, %c0_125] : memref<9x128x128xbf16, #tpu.memory_space<vmem>>, vector<1x128x128xbf16>
    %106 = vector.shape_cast %105 : vector<1x128x128xbf16> to vector<128x128xbf16>
    %cst_126 = arith.constant dense<0.000000e+00> : vector<64x128xf32>
    %107 = tpu.matmul %104, %106, %cst_126 {dimension_numbers = #tpu.dot_dimension_numbers<[1], [0], [0], [1], [0, 0, 1, 1], [], []>} : vector<64x128xbf16>, vector<128x128xbf16>, vector<64x128xf32> -> vector<64x128xf32>
    %108 = arith.addf %101, %107 : vector<64x128xf32>
    %c1_127 = arith.constant 1 : index
    %c2_128 = arith.constant 2 : index
    %c0_129 = arith.constant 0 : index
    %109 = vector.load %arg8[%c1_127, %c2_128, %c0_129] : memref<10x10x128xf32, #tpu.memory_space<vmem>>, vector<8x8x128xf32>
    %110 = arith.truncf %109 : vector<8x8x128xf32> to vector<8x8x128xbf16>
    %111 = vector.shape_cast %110 : vector<8x8x128xbf16> to vector<64x128xbf16>
    %c5_130 = arith.constant 5 : index
    %c0_131 = arith.constant 0 : index
    %c0_132 = arith.constant 0 : index
    %112 = vector.load %arg4[%c5_130, %c0_131, %c0_132] : memref<9x128x128xbf16, #tpu.memory_space<vmem>>, vector<1x128x128xbf16>
    %113 = vector.shape_cast %112 : vector<1x128x128xbf16> to vector<128x128xbf16>
    %cst_133 = arith.constant dense<0.000000e+00> : vector<64x128xf32>
    %114 = tpu.matmul %111, %113, %cst_133 {dimension_numbers = #tpu.dot_dimension_numbers<[1], [0], [0], [1], [0, 0, 1, 1], [], []>} : vector<64x128xbf16>, vector<128x128xbf16>, vector<64x128xf32> -> vector<64x128xf32>
    %115 = arith.addf %108, %114 : vector<64x128xf32>
    %c2_134 = arith.constant 2 : index
    %c0_135 = arith.constant 0 : index
    %c0_136 = arith.constant 0 : index
    %116 = vector.load %arg8[%c2_134, %c0_135, %c0_136] : memref<10x10x128xf32, #tpu.memory_space<vmem>>, vector<8x8x128xf32>
    %117 = arith.truncf %116 : vector<8x8x128xf32> to vector<8x8x128xbf16>
    %118 = vector.shape_cast %117 : vector<8x8x128xbf16> to vector<64x128xbf16>
    %c6_137 = arith.constant 6 : index
    %c0_138 = arith.constant 0 : index
    %c0_139 = arith.constant 0 : index
    %119 = vector.load %arg4[%c6_137, %c0_138, %c0_139] : memref<9x128x128xbf16, #tpu.memory_space<vmem>>, vector<1x128x128xbf16>
    %120 = vector.shape_cast %119 : vector<1x128x128xbf16> to vector<128x128xbf16>
    %cst_140 = arith.constant dense<0.000000e+00> : vector<64x128xf32>
    %121 = tpu.matmul %118, %120, %cst_140 {dimension_numbers = #tpu.dot_dimension_numbers<[1], [0], [0], [1], [0, 0, 1, 1], [], []>} : vector<64x128xbf16>, vector<128x128xbf16>, vector<64x128xf32> -> vector<64x128xf32>
    %122 = arith.addf %115, %121 : vector<64x128xf32>
    %c2_141 = arith.constant 2 : index
    %c1_142 = arith.constant 1 : index
    %c0_143 = arith.constant 0 : index
    %123 = vector.load %arg8[%c2_141, %c1_142, %c0_143] : memref<10x10x128xf32, #tpu.memory_space<vmem>>, vector<8x8x128xf32>
    %124 = arith.truncf %123 : vector<8x8x128xf32> to vector<8x8x128xbf16>
    %125 = vector.shape_cast %124 : vector<8x8x128xbf16> to vector<64x128xbf16>
    %c7_144 = arith.constant 7 : index
    %c0_145 = arith.constant 0 : index
    %c0_146 = arith.constant 0 : index
    %126 = vector.load %arg4[%c7_144, %c0_145, %c0_146] : memref<9x128x128xbf16, #tpu.memory_space<vmem>>, vector<1x128x128xbf16>
    %127 = vector.shape_cast %126 : vector<1x128x128xbf16> to vector<128x128xbf16>
    %cst_147 = arith.constant dense<0.000000e+00> : vector<64x128xf32>
    %128 = tpu.matmul %125, %127, %cst_147 {dimension_numbers = #tpu.dot_dimension_numbers<[1], [0], [0], [1], [0, 0, 1, 1], [], []>} : vector<64x128xbf16>, vector<128x128xbf16>, vector<64x128xf32> -> vector<64x128xf32>
    %129 = arith.addf %122, %128 : vector<64x128xf32>
    %c2_148 = arith.constant 2 : index
    %c2_149 = arith.constant 2 : index
    %c0_150 = arith.constant 0 : index
    %130 = vector.load %arg8[%c2_148, %c2_149, %c0_150] : memref<10x10x128xf32, #tpu.memory_space<vmem>>, vector<8x8x128xf32>
    %131 = arith.truncf %130 : vector<8x8x128xf32> to vector<8x8x128xbf16>
    %132 = vector.shape_cast %131 : vector<8x8x128xbf16> to vector<64x128xbf16>
    %c8_151 = arith.constant 8 : index
    %c0_152 = arith.constant 0 : index
    %c0_153 = arith.constant 0 : index
    %133 = vector.load %arg4[%c8_151, %c0_152, %c0_153] : memref<9x128x128xbf16, #tpu.memory_space<vmem>>, vector<1x128x128xbf16>
    %134 = vector.shape_cast %133 : vector<1x128x128xbf16> to vector<128x128xbf16>
    %cst_154 = arith.constant dense<0.000000e+00> : vector<64x128xf32>
    %135 = tpu.matmul %132, %134, %cst_154 {dimension_numbers = #tpu.dot_dimension_numbers<[1], [0], [0], [1], [0, 0, 1, 1], [], []>} : vector<64x128xbf16>, vector<128x128xbf16>, vector<64x128xf32> -> vector<64x128xf32>
    %136 = arith.addf %129, %135 : vector<64x128xf32>
    %c0_155 = arith.constant 0 : index
    %c1_156 = arith.constant 1 : index
    %c1_157 = arith.constant 1 : index
    %c0_158 = arith.constant 0 : index
    %c0_159 = arith.constant 0 : index
    %c0_160 = arith.constant 0 : index
    %137 = vector.load %arg1[%c0_155, %c1_156, %c1_157, %c0_158, %c0_159, %c0_160] : memref<1x2x2x9x9x4xbf16, #tpu.memory_space<vmem>>, vector<1x1x1x8x8x4xbf16>
    %138 = vector.shape_cast %137 : vector<1x1x1x8x8x4xbf16> to vector<8x8x4xbf16>
    %139 = vector.shape_cast %138 : vector<8x8x4xbf16> to vector<64x4xbf16>
    %c0_161 = arith.constant 0 : index
    %c0_162 = arith.constant 0 : index
    %140 = vector.load %arg5[%c0_161, %c0_162] : memref<4x128xbf16, #tpu.memory_space<vmem>>, vector<4x128xbf16>
    %cst_163 = arith.constant dense<0.000000e+00> : vector<64x128xf32>
    %141 = tpu.matmul %139, %140, %cst_163 {dimension_numbers = #tpu.dot_dimension_numbers<[1], [0], [0], [1], [0, 0, 1, 1], [], []>} : vector<64x4xbf16>, vector<4x128xbf16>, vector<64x128xf32> -> vector<64x128xf32>
    %142 = arith.addf %136, %141 : vector<64x128xf32>
    %c0_164 = arith.constant 0 : index
    %c0_165 = arith.constant 0 : index
    %143 = vector.load %arg6[%c0_164, %c0_165] : memref<1x128xf32, #tpu.memory_space<vmem>>, vector<1x128xf32>
    %144 = vector.broadcast %143 : vector<1x128xf32> to vector<64x128xf32>
    %145 = arith.addf %142, %144 : vector<64x128xf32>
    %cst_166 = arith.constant 0.000000e+00 : f32
    %146 = vector.broadcast %cst_166 : f32 to vector<64x128xf32>
    %147 = arith.maximumf %145, %146 : vector<64x128xf32>
    %148 = vector.shape_cast %147 : vector<64x128xf32> to vector<8x8x128xf32>
    %c0_167 = arith.constant 0 : index
    %c0_168 = arith.constant 0 : index
    %c0_169 = arith.constant 0 : index
    %c0_170 = arith.constant 0 : index
    %149 = vector.load %arg7[%c0_167, %c0_168, %c0_169, %c0_170] : memref<1x8x8x128xf32, #tpu.memory_space<vmem>>, vector<1x8x8x128xf32>
    %150 = vector.shape_cast %149 : vector<1x8x8x128xf32> to vector<8x8x128xf32>
    %151 = vector.shape_cast %148 : vector<8x8x128xf32> to vector<1x8x8x128xf32>
    tpu.vector_store %arg7[%c0_167, %c0_168, %c0_169, %c0_170], %151 {strides = array<i32>} : memref<1x8x8x128xf32, #tpu.memory_space<vmem>>, vector<1x8x8x128xf32>,
    return
  }
  func.func @transform_0(%arg0: i32) -> (i32, i32, i32, i32, i32, i32) {
    %c0_i32 = arith.constant 0 : i32
    %c0_i32_0 = arith.constant 0 : i32
    %c0_i32_1 = arith.constant 0 : i32
    %c0_i32_2 = arith.constant 0 : i32
    %c0_i32_3 = arith.constant 0 : i32
    %c0_i32_4 = arith.constant 0 : i32
    return %arg0, %c0_i32, %c0_i32_0, %c0_i32_1, %c0_i32_2, %c0_i32_3 : i32, i32, i32, i32, i32, i32
  }
  func.func @transform_1(%arg0: i32) -> (i32, i32, i32) {
    %c0_i32 = arith.constant 0 : i32
    %c0_i32_0 = arith.constant 0 : i32
    %c0_i32_1 = arith.constant 0 : i32
    %c0_i32_2 = arith.constant 0 : i32
    return %c0_i32, %c0_i32_0, %c0_i32_1 : i32, i32, i32
  }
  func.func @transform_2(%arg0: i32) -> (i32, i32) {
    %c0_i32 = arith.constant 0 : i32
    %c0_i32_0 = arith.constant 0 : i32
    %c0_i32_1 = arith.constant 0 : i32
    return %c0_i32, %c0_i32_0 : i32, i32
  }
  func.func @transform_3(%arg0: i32) -> (i32, i32, i32) {
    %c0_i32 = arith.constant 0 : i32
    %c0_i32_0 = arith.constant 0 : i32
    %c0_i32_1 = arith.constant 0 : i32
    %c0_i32_2 = arith.constant 0 : i32
    return %c0_i32, %c0_i32_0, %c0_i32_1 : i32, i32, i32
  }
  func.func @transform_4(%arg0: i32) -> (i32, i32) {
    %c0_i32 = arith.constant 0 : i32
    %c0_i32_0 = arith.constant 0 : i32
    %c0_i32_1 = arith.constant 0 : i32
    return %c0_i32, %c0_i32_0 : i32, i32
  }
  func.func @transform_5(%arg0: i32) -> (i32, i32) {
    %c0_i32 = arith.constant 0 : i32
    %c0_i32_0 = arith.constant 0 : i32
    %c0_i32_1 = arith.constant 0 : i32
    return %c0_i32, %c0_i32_0 : i32, i32
  }
  func.func @transform_6(%arg0: i32) -> (i32, i32, i32, i32) {
    %c0_i32 = arith.constant 0 : i32
    %c0_i32_0 = arith.constant 0 : i32
    %c0_i32_1 = arith.constant 0 : i32
    %c0_i32_2 = arith.constant 0 : i32
    return %arg0, %c0_i32, %c0_i32_0, %c0_i32_1 : i32, i32, i32, i32
  }
}

</mosaic_0001>

<llo_original>
// kernel: restnet_down_block.1
$region0: #{restnet_down_block.1}
  #allocation0 [shape = 'u32[]', space=smem, size = 0x4, offset = 0x4, fixed_abs, tag = 'smem constant byte address 0x4 - core index']
  #allocation1 [shape = 'u32[72,128]{1,0:T(1,128)}', space=vmem, size = 0x9000, scoped, tag = 'internal scratch']
  #allocation2 [shape = 'f32[10,10,128]{2,1,0:T(8,128)}', space=vmem, size = 0x14000, scoped, tag = 'scratch operand']
  %s0 = inlined_call_operand.vmem [shape: bf16[2,2,2,9,9,4], index: 0, kind: input, shape index: {}]
  %s1 = inlined_call_operand.vmem [shape: bf16[9,4,128], index: 1, kind: input, shape index: {}]
  %s2 = inlined_call_operand.vmem [shape: f32[1,128], index: 2, kind: input, shape index: {}]
  %s3 = inlined_call_operand.vmem [shape: bf16[9,128,128], index: 3, kind: input, shape index: {}]
  %s4 = inlined_call_operand.vmem [shape: bf16[4,128], index: 4, kind: input, shape index: {}]
  %s5 = inlined_call_operand.vmem [shape: f32[1,128], index: 5, kind: input, shape index: {}]
  %s6 = inlined_call_operand.vmem [shape: f32[2,8,8,128], index: 6, kind: output, shape index: {}]
  %s7 = sld [smem:[#allocation0]]
  $region57: #{restnet_down_block.1} parent=0
    _
  %s9 = ssub.s32 1, %s7
  %s10 = scalar_select 0, %s9, %s7
  loop: start=0, step=1, limit=4
  $region2: #{restnet_down_block.1} parent=0 // loop_pre_header
    _
  $region3: #{restnet_down_block.1} parent=0 // loop_header
    %s12 = sphi 0, %s16
    %p13 = scmp.ge.s32.totalorder %s12, 4
    %s22 = sphi 0, %s24
    %s25 = sphi 0, %s22
    %s26 = sphi 0, %s25
    %s42 = sphi 0, %s26
    %s46 = sphi 0, %s46
    %s48 = sphi 0, %s46
    %s49 = sphi 0, %s48
    %s63 = sphi 0, %s49
    %s67 = sphi 0, %s67
    %s69 = sphi 0, %s67
    %s70 = sphi 0, %s69
    %s84 = sphi 0, %s70
    %s88 = sphi 0, %s88
    %s90 = sphi 0, %s88
    %s91 = sphi 0, %s90
    %s105 = sphi 0, %s91
    %s109 = sphi 0, %s109
    %s111 = sphi 0, %s109
    %s112 = sphi 0, %s111
    %s126 = sphi 0, %s112
    %s130 = sphi 0, %s130
    %s132 = sphi 0, %s130
    %s133 = sphi 0, %s132
    %s147 = sphi 0, %s133
    %s153 = sphi 0, %s155
    %s156 = sphi 0, %s153
    %s157 = sphi 0, %s156
    %s173 = sphi 0, %s157
  $region4: #{restnet_down_block.1} parent=0 // loop_header_branch
    %15 = sbr.rel (%p13) target = $region8
  $region5: #{restnet_down_block.1} parent=0 // loop_body
    %s17 = ssub.s32 %s12, 1
    %s18 = ssub.s32 %s12, 2
    %s19 = sadd.s32 %s12, 1
    %s20 = ssub.s32 %s12, %s19
    %p21 = scmp.eq.s32.totalorder %s20, 0
    %s23 = sadd.s32 %s22, 1
    %s24 = scalar_select %p21, %s22, %s23
    %p27 = pneg %p21
    %p28 = scmp.eq.s32.totalorder %s12, 1
    %p29 = por %p27, %p28
    %p30 = scmp.ne.s32.totalorder %s22, %s25
    %p31 = scmp.eq.s32.totalorder %s12, 0
    %p32 = por %p30, %p31
    %p33 = scmp.ne.s32.totalorder %s22, %s25
    %p34 = scmp.eq.s32.totalorder %s17, 1
    %p35 = por %p33, %p34
    %p36 = scmp.ne.s32.totalorder %s25, %s26
    %p37 = scmp.eq.s32.totalorder %s17, 0
    %p38 = por %p36, %p37
    %p39 = scmp.ne.s32.totalorder %s25, %s26
    %p40 = scmp.eq.s32.totalorder %s18, 1
    %p41 = por %p39, %p40
    %p43 = scmp.ne.s32.totalorder %s26, %s42
    %p44 = scmp.eq.s32.totalorder %s18, 0
    %p45 = por %p43, %p44
    %s47 = sadd.s32 %s46, 1
    %p50 = scmp.eq.s32.totalorder %s12, 1
    %p51 = scmp.ne.s32.totalorder %s46, %s48
    %p52 = scmp.eq.s32.totalorder %s12, 0
    %p53 = por %p51, %p52
    %p54 = scmp.ne.s32.totalorder %s46, %s48
    %p55 = scmp.eq.s32.totalorder %s17, 1
    %p56 = por %p54, %p55
    %p57 = scmp.ne.s32.totalorder %s48, %s49
    %p58 = scmp.eq.s32.totalorder %s17, 0
    %p59 = por %p57, %p58
    %p60 = scmp.ne.s32.totalorder %s48, %s49
    %p61 = scmp.eq.s32.totalorder %s18, 1
    %p62 = por %p60, %p61
    %p64 = scmp.ne.s32.totalorder %s49, %s63
    %p65 = scmp.eq.s32.totalorder %s18, 0
    %p66 = por %p64, %p65
    %s68 = sadd.s32 %s67, 1
    %p71 = scmp.eq.s32.totalorder %s12, 1
    %p72 = scmp.ne.s32.totalorder %s67, %s69
    %p73 = scmp.eq.s32.totalorder %s12, 0
    %p74 = por %p72, %p73
    %p75 = scmp.ne.s32.totalorder %s67, %s69
    %p76 = scmp.eq.s32.totalorder %s17, 1
    %p77 = por %p75, %p76
    %p78 = scmp.ne.s32.totalorder %s69, %s70
    %p79 = scmp.eq.s32.totalorder %s17, 0
    %p80 = por %p78, %p79
    %p81 = scmp.ne.s32.totalorder %s69, %s70
    %p82 = scmp.eq.s32.totalorder %s18, 1
    %p83 = por %p81, %p82
    %p85 = scmp.ne.s32.totalorder %s70, %s84
    %p86 = scmp.eq.s32.totalorder %s18, 0
    %p87 = por %p85, %p86
    %s89 = sadd.s32 %s88, 1
    %p92 = scmp.eq.s32.totalorder %s12, 1
    %p93 = scmp.ne.s32.totalorder %s88, %s90
    %p94 = scmp.eq.s32.totalorder %s12, 0
    %p95 = por %p93, %p94
    %p96 = scmp.ne.s32.totalorder %s88, %s90
    %p97 = scmp.eq.s32.totalorder %s17, 1
    %p98 = por %p96, %p97
    %p99 = scmp.ne.s32.totalorder %s90, %s91
    %p100 = scmp.eq.s32.totalorder %s17, 0
    %p101 = por %p99, %p100
    %p102 = scmp.ne.s32.totalorder %s90, %s91
    %p103 = scmp.eq.s32.totalorder %s18, 1
    %p104 = por %p102, %p103
    %p106 = scmp.ne.s32.totalorder %s91, %s105
    %p107 = scmp.eq.s32.totalorder %s18, 0
    %p108 = por %p106, %p107
    %s110 = sadd.s32 %s109, 1
    %p113 = scmp.eq.s32.totalorder %s12, 1
    %p114 = scmp.ne.s32.totalorder %s109, %s111
    %p115 = scmp.eq.s32.totalorder %s12, 0
    %p116 = por %p114, %p115
    %p117 = scmp.ne.s32.totalorder %s109, %s111
    %p118 = scmp.eq.s32.totalorder %s17, 1
    %p119 = por %p117, %p118
    %p120 = scmp.ne.s32.totalorder %s111, %s112
    %p121 = scmp.eq.s32.totalorder %s17, 0
    %p122 = por %p120, %p121
    %p123 = scmp.ne.s32.totalorder %s111, %s112
    %p124 = scmp.eq.s32.totalorder %s18, 1
    %p125 = por %p123, %p124
    %p127 = scmp.ne.s32.totalorder %s112, %s126
    %p128 = scmp.eq.s32.totalorder %s18, 0
    %p129 = por %p127, %p128
    %s131 = sadd.s32 %s130, 1
    %p134 = scmp.eq.s32.totalorder %s12, 1
    %p135 = scmp.ne.s32.totalorder %s130, %s132
    %p136 = scmp.eq.s32.totalorder %s12, 0
    %p137 = por %p135, %p136
    %p138 = scmp.ne.s32.totalorder %s130, %s132
    %p139 = scmp.eq.s32.totalorder %s17, 1
    %p140 = por %p138, %p139
    %p141 = scmp.ne.s32.totalorder %s132, %s133
    %p142 = scmp.eq.s32.totalorder %s17, 0
    %p143 = por %p141, %p142
    %p144 = scmp.ne.s32.totalorder %s132, %s133
    %p145 = scmp.eq.s32.totalorder %s18, 1
    %p146 = por %p144, %p145
    %p148 = scmp.ne.s32.totalorder %s133, %s147
    %p149 = scmp.eq.s32.totalorder %s18, 0
    %p150 = por %p148, %p149
    %s151 = ssub.s32 %s12, %s19
    %p152 = scmp.eq.s32.totalorder %s151, 0
    %s154 = sadd.s32 %s153, 1
    %s155 = scalar_select %p152, %s153, %s154
    %p158 = pneg %p152
    %p159 = scmp.eq.s32.totalorder %s12, 1
    %p160 = por %p158, %p159
    %p161 = scmp.ne.s32.totalorder %s153, %s156
    %p162 = scmp.eq.s32.totalorder %s12, 0
    %p163 = por %p161, %p162
    %p164 = scmp.ne.s32.totalorder %s153, %s156
    %p165 = scmp.eq.s32.totalorder %s17, 1
    %p166 = por %p164, %p165
    %p167 = scmp.ne.s32.totalorder %s156, %s157
    %p168 = scmp.eq.s32.totalorder %s17, 0
    %p169 = por %p167, %p168
    %p170 = scmp.ne.s32.totalorder %s156, %s157
    %p171 = scmp.eq.s32.totalorder %s18, 1
    %p172 = por %p170, %p171
    %p174 = scmp.ne.s32.totalorder %s157, %s173
    %p175 = scmp.eq.s32.totalorder %s18, 0
    %p176 = por %p174, %p175
    %p177 = scmp.le.s32.totalorder 1, %s12
    %p178 = scmp.lt.s32.totalorder %s12, 3
    %p179 = pnand %p177, %p178
    %p180 = pneg %p179
    // Predicated region
    $region9: #{restnet_down_block.1} parent=5 // pred_check
      _
    $region10: #{restnet_down_block.1} parent=5 // pred_check_branch
      %182 = sbr.rel (%p179) target = $region12
    $region11: #{restnet_down_block.1} parent=5 // pred_region
      %s183 = ssub.s32 %s12, 1
      // Predicated region
      $region13: #{restnet_down_block.1} parent=11 // pred_check
        %p184 = pneg %p59
      $region14: #{restnet_down_block.1} parent=11 // pred_check_branch
        %186 = sbr.rel (%p184) target = $region16
      $region15: #{restnet_down_block.1} parent=11 // pred_region
        _
      $region16: #{restnet_down_block.1} parent=11 // pred_fallthru
        _
      // Predicated region
      $region17: #{restnet_down_block.1} parent=11 // pred_check
        %p187 = pneg %p80
      $region18: #{restnet_down_block.1} parent=11 // pred_check_branch
        %189 = sbr.rel (%p187) target = $region20
      $region19: #{restnet_down_block.1} parent=11 // pred_region
        _
      $region20: #{restnet_down_block.1} parent=11 // pred_fallthru
        _
      // Predicated region
      $region21: #{restnet_down_block.1} parent=11 // pred_check
        %p190 = pneg %p101
      $region22: #{restnet_down_block.1} parent=11 // pred_check_branch
        %192 = sbr.rel (%p190) target = $region24
      $region23: #{restnet_down_block.1} parent=11 // pred_region
        _
      $region24: #{restnet_down_block.1} parent=11 // pred_fallthru
        _
      // Predicated region
      $region25: #{restnet_down_block.1} parent=11 // pred_check
        %p193 = pneg %p122
      $region26: #{restnet_down_block.1} parent=11 // pred_check_branch
        %195 = sbr.rel (%p193) target = $region28
      $region27: #{restnet_down_block.1} parent=11 // pred_region
        _
      $region28: #{restnet_down_block.1} parent=11 // pred_fallthru
        _
      // Predicated region
      $region29: #{restnet_down_block.1} parent=11 // pred_check
        %p196 = pneg %p143
      $region30: #{restnet_down_block.1} parent=11 // pred_check_branch
        %198 = sbr.rel (%p196) target = $region32
      $region31: #{restnet_down_block.1} parent=11 // pred_region
        _
      $region32: #{restnet_down_block.1} parent=11 // pred_fallthru
        _
    $region12: #{restnet_down_block.1} parent=5 // pred_fallthru
      _
    %p199 = scmp.lt.s32.totalorder %s12, 2
    // Predicated region
    $region33: #{restnet_down_block.1} parent=5 // pred_check
      %p200 = pneg %p199
    $region34: #{restnet_down_block.1} parent=5 // pred_check_branch
      %202 = sbr.rel (%p200) target = $region36
    $region35: #{restnet_down_block.1} parent=5 // pred_region
      // Predicated region
      $region37: #{restnet_down_block.1} parent=35 // pred_check
        %p203 = pneg %p32
      $region38: #{restnet_down_block.1} parent=35 // pred_check_branch
        %205 = sbr.rel (%p203) target = $region40
      $region39: #{restnet_down_block.1} parent=35 // pred_region
        %p206 = scmp.lt.s32.totalorder %s12, 1
        %s207 = scalar_select %p206, %s12, 1
        %s208 = smul.addr %s207, 72
        %s209 = smul.addr %s208, 4
        %s210 = scalar_lea.vmem %s0, %s209
      $region40: #{restnet_down_block.1} parent=35 // pred_fallthru
        _
    $region36: #{restnet_down_block.1} parent=5 // pred_fallthru
      _
    %p211 = scmp.le.s32.totalorder 1, %s12
    %p212 = scmp.lt.s32.totalorder %s12, 3
    %p213 = pnand %p211, %p212
    %p214 = pneg %p213
    // Predicated region
    $region41: #{restnet_down_block.1} parent=5 // pred_check
      _
    $region42: #{restnet_down_block.1} parent=5 // pred_check_branch
      %216 = sbr.rel (%p213) target = $region44
    $region43: #{restnet_down_block.1} parent=5 // pred_region
      %s217 = ssub.s32 %s12, 1
      %p218 = scmp.lt.s32.totalorder %s17, 1
      %s219 = scalar_select %p218, %s17, 1
      %s220 = smul.addr %s219, 72
      %s221 = smul.addr %s220, 4
      %s222 = scalar_lea.vmem %s0, %s221
      %p223 = pneg %p38
      %p224 = pneg %p35
      %p225 = pneg %p59
      %p226 = pneg %p56
      %p227 = pneg %p80
      %p228 = pneg %p77
      %p229 = pneg %p101
      %p230 = pneg %p98
      %p231 = pneg %p122
      %p232 = pneg %p119
      %p233 = pneg %p143
      %p234 = pneg %p140
      %p235 = pneg %p169
      %p236 = pneg %p166
      %p237 = scmp.lt.s32.totalorder %s17, 1
      %s238 = scalar_select %p237, %s17, 1
      %s239 = smul.addr %s238, 8
      %s240 = smul.addr %s239, 8
      %s241 = scalar_lea.vmem %s6, %s240
      %p242 = scmp.lt.s32.totalorder %s17, 1
      %s243 = scalar_select %p242, %s17, 1
      %s244 = smul.addr %s243, 72
      %s245 = smul.addr %s244, 4
      %s246 = scalar_lea.vmem %s0, %s245
      %p247 = scmp.lt.s32.totalorder %s17, 1
      %s248 = scalar_select %p247, %s17, 1
      %s249 = smul.addr %s248, 8
      %s250 = smul.addr %s249, 8
      %s251 = scalar_lea.vmem %s6, %s250
      %v253 = vld [vmem:[%s246] sm:$0xf]
      %v254 = vld [vmem:[%s246 + $0x8] sm:$0xf]
      %v255 = vld [vmem:[%s246 + $0x10] sm:$0xf]
      %v256 = vld [vmem:[%s246 + $0x18] sm:$0xf]
      %v257 = vld [vmem:[%s246 + $0x20] sm:$0xf]
      %v258 = vld [vmem:[%s246 + $0x28] sm:$0xf]
      %v259 = vld [vmem:[%s246 + $0x30] sm:$0xf]
      %v260 = vld [vmem:[%s246 + $0x38] sm:$0xf]
      %v261 = vld [vmem:[%s1] sm:$0x3]
      %s262 = scalar_lea.vmem %s246, 72
      %v263 = vld [vmem:[%s262] sm:$0xf]
      %v264 = vld [vmem:[%s262 + $0x8] sm:$0xf]
      %v265 = vld [vmem:[%s262 + $0x10] sm:$0xf]
      %v266 = vld [vmem:[%s262 + $0x18] sm:$0xf]
      %v267 = vld [vmem:[%s262 + $0x20] sm:$0xf]
      %v268 = vld [vmem:[%s262 + $0x28] sm:$0xf]
      %v269 = vld [vmem:[%s262 + $0x30] sm:$0xf]
      %v270 = vld [vmem:[%s262 + $0x38] sm:$0xf]
      %s271 = scalar_lea.vmem %s1, 2
      %v272 = vld [vmem:[%s271] sm:$0x3]
      %v281 = vunpack.c.l.b16 %v263
      %v282 = vunpack.c.l.b16 %v264
      %v283 = vunpack.c.l.b16 %v265
      %v284 = vunpack.c.l.b16 %v266
      %v285 = vunpack.c.l.b16 %v267
      %v286 = vunpack.c.l.b16 %v268
      %v287 = vunpack.c.l.b16 %v269
      %v288 = vunpack.c.l.b16 %v270
      %v289 = vpack.c.b16 %v282, %v281
      %v290 = vpack.c.b16 %v284, %v283
      %v291 = vpack.c.b16 %v286, %v285
      %v292 = vpack.c.b16 %v288, %v287
      %vm293 = vcmask 31744
      %v295 = vsel %vm293, %v289, 0
      %v298 = vsel %vm293, %v290, 0
      %v301 = vsel %vm293, %v291, 0
      %v304 = vsel %vm293, %v292, 0
      %vm306 = vcmask 1041408
      %v308 = vsel %vm306, %v272, 0
      %310 = vmatpush.bf16.msra.mxu0 0
      %311 = vmatpush.bf16.msra.mxu0 0
      %312 = vmatpush.bf16.msra.mxu0 0
      %313 = vmatpush.bf16.msra.mxu0 0
      %314 = vmatpush.bf16.msra.mxu0 0
      %315 = vmatpush.bf16.msra.mxu0 0
      %316 = vmatpush.bf16.msra.mxu0 0
      %317 = vmatpush.bf16.msra.mxu0 %v308
      %318 = vmatmul.bf16.gmra.mxu0 %v295
      %v319 = vpop.f32.mrf.mxu0
      %v320 = vadd.f32 0.0, %v319
      %v321 = vpop.f32.mrf.mxu0
      %v322 = vadd.f32 0.0, %v321
      %323 = vmatmul.bf16.gmra.mxu0 %v298
      %v324 = vpop.f32.mrf.mxu0
      %v325 = vadd.f32 0.0, %v324
      %v326 = vpop.f32.mrf.mxu0
      %v327 = vadd.f32 0.0, %v326
      %328 = vmatmul.bf16.gmra.mxu0 %v301
      %v329 = vpop.f32.mrf.mxu0
      %v330 = vadd.f32 0.0, %v329
      %v331 = vpop.f32.mrf.mxu0
      %v332 = vadd.f32 0.0, %v331
      %333 = vmatmul.bf16.gmra.mxu0 %v304
      %v334 = vpop.f32.mrf.mxu0
      %v335 = vadd.f32 0.0, %v334
      %v336 = vpop.f32.mrf.mxu0
      %v337 = vadd.f32 0.0, %v336
      %338 = vdwg.mxu0
      %v347 = vunpack.c.l.b16 %v253
      %v348 = vunpack.c.l.b16 %v254
      %v349 = vunpack.c.l.b16 %v255
      %v350 = vunpack.c.l.b16 %v256
      %v351 = vunpack.c.l.b16 %v257
      %v352 = vunpack.c.l.b16 %v258
      %v353 = vunpack.c.l.b16 %v259
      %v354 = vunpack.c.l.b16 %v260
      %v355 = vpack.c.b16 %v348, %v347
      %v356 = vpack.c.b16 %v350, %v349
      %v357 = vpack.c.b16 %v352, %v351
      %v358 = vpack.c.b16 %v354, %v353
      %v360 = vsel %vm293, %v355, 0
      %v363 = vsel %vm293, %v356, 0
      %v366 = vsel %vm293, %v357, 0
      %v369 = vsel %vm293, %v358, 0
      %v372 = vsel %vm306, %v261, 0
      %374 = vmatpush.bf16.msra.mxu0 0
      %375 = vmatpush.bf16.msra.mxu0 0
      %376 = vmatpush.bf16.msra.mxu0 0
      %377 = vmatpush.bf16.msra.mxu0 0
      %378 = vmatpush.bf16.msra.mxu0 0
      %379 = vmatpush.bf16.msra.mxu0 0
      %380 = vmatpush.bf16.msra.mxu0 0
      %381 = vmatpush.bf16.msra.mxu0 %v372
      %382 = vmatmul.bf16.gmra.mxu0 %v360
      %v383 = vpop.f32.mrf.mxu0
      %v384 = vadd.f32 %v320, %v383
      %v385 = vpop.f32.mrf.mxu0
      %v386 = vadd.f32 %v322, %v385
      %387 = vmatmul.bf16.gmra.mxu0 %v363
      %v388 = vpop.f32.mrf.mxu0
      %v389 = vadd.f32 %v325, %v388
      %v390 = vpop.f32.mrf.mxu0
      %v391 = vadd.f32 %v327, %v390
      %392 = vmatmul.bf16.gmra.mxu0 %v366
      %v393 = vpop.f32.mrf.mxu0
      %v394 = vadd.f32 %v330, %v393
      %v395 = vpop.f32.mrf.mxu0
      %v396 = vadd.f32 %v332, %v395
      %397 = vmatmul.bf16.gmra.mxu0 %v369
      %v398 = vpop.f32.mrf.mxu0
      %v399 = vadd.f32 %v335, %v398
      %v400 = vpop.f32.mrf.mxu0
      %v401 = vadd.f32 %v337, %v400
      %402 = vdwg.mxu0
      %v403 = vld [vmem:[%s246] sm:$0xf]
      %v404 = vld [vmem:[%s246 + $0x4] sm:$0x1]
      %v405 = vld [vmem:[%s246 + $0x8] sm:$0xf]
      %v406 = vld [vmem:[%s246 + $0xc] sm:$0x1]
      %v407 = vld [vmem:[%s246 + $0x10] sm:$0xf]
      %v408 = vld [vmem:[%s246 + $0x14] sm:$0x1]
      %v409 = vld [vmem:[%s246 + $0x18] sm:$0xf]
      %v410 = vld [vmem:[%s246 + $0x1c] sm:$0x1]
      %v411 = vld [vmem:[%s246 + $0x20] sm:$0xf]
      %v412 = vld [vmem:[%s246 + $0x24] sm:$0x1]
      %v413 = vld [vmem:[%s246 + $0x28] sm:$0xf]
      %v414 = vld [vmem:[%s246 + $0x2c] sm:$0x1]
      %v415 = vld [vmem:[%s246 + $0x30] sm:$0xf]
      %v416 = vld [vmem:[%s246 + $0x34] sm:$0x1]
      %v417 = vld [vmem:[%s246 + $0x38] sm:$0xf]
      %v418 = vld [vmem:[%s246 + $0x3c] sm:$0x1]
      %vm419 = vsmask.f32 3328
      %vm420 = vsmask.f32 7440
      %vm421 = vmor %vm419, %vm420
      %v423 = vshrl.u32 %v403, 16
      %v425 = vrot.slane %v423, 4
      %v426 = vshll.u32 %v403, 16
      %v428 = vrot.slane %v426, 5
      %v429 = vor.u32 %v425, %v428
      %v430 = vrot.slane %v429, 4
      %v432 = vshll.u32 %v404, 16
      %v434 = vrot.slane %v432, 5
      %v435 = vsel %vm421, %v430, %v434
      %v437 = vshrl.u32 %v405, 16
      %v439 = vrot.slane %v437, 4
      %v440 = vshll.u32 %v405, 16
      %v442 = vrot.slane %v440, 5
      %v443 = vor.u32 %v439, %v442
      %v444 = vrot.slane %v443, 4
      %v446 = vshll.u32 %v406, 16
      %v448 = vrot.slane %v446, 5
      %v449 = vsel %vm421, %v444, %v448
      %v451 = vshrl.u32 %v407, 16
      %v453 = vrot.slane %v451, 4
      %v454 = vshll.u32 %v407, 16
      %v456 = vrot.slane %v454, 5
      %v457 = vor.u32 %v453, %v456
      %v458 = vrot.slane %v457, 4
      %v460 = vshll.u32 %v408, 16
      %v462 = vrot.slane %v460, 5
      %v463 = vsel %vm421, %v458, %v462
      %v465 = vshrl.u32 %v409, 16
      %v467 = vrot.slane %v465, 4
      %v468 = vshll.u32 %v409, 16
      %v470 = vrot.slane %v468, 5
      %v471 = vor.u32 %v467, %v470
      %v472 = vrot.slane %v471, 4
      %v474 = vshll.u32 %v410, 16
      %v476 = vrot.slane %v474, 5
      %v477 = vsel %vm421, %v472, %v476
      %v479 = vshrl.u32 %v411, 16
      %v481 = vrot.slane %v479, 4
      %v482 = vshll.u32 %v411, 16
      %v484 = vrot.slane %v482, 5
      %v485 = vor.u32 %v481, %v484
      %v486 = vrot.slane %v485, 4
      %v488 = vshll.u32 %v412, 16
      %v490 = vrot.slane %v488, 5
      %v491 = vsel %vm421, %v486, %v490
      %v493 = vshrl.u32 %v413, 16
      %v495 = vrot.slane %v493, 4
      %v496 = vshll.u32 %v413, 16
      %v498 = vrot.slane %v496, 5
      %v499 = vor.u32 %v495, %v498
      %v500 = vrot.slane %v499, 4
      %v502 = vshll.u32 %v414, 16
      %v504 = vrot.slane %v502, 5
      %v505 = vsel %vm421, %v500, %v504
      %v507 = vshrl.u32 %v415, 16
      %v509 = vrot.slane %v507, 4
      %v510 = vshll.u32 %v415, 16
      %v512 = vrot.slane %v510, 5
      %v513 = vor.u32 %v509, %v512
      %v514 = vrot.slane %v513, 4
      %v516 = vshll.u32 %v416, 16
      %v518 = vrot.slane %v516, 5
      %v519 = vsel %vm421, %v514, %v518
      %v521 = vshrl.u32 %v417, 16
      %v523 = vrot.slane %v521, 4
      %v524 = vshll.u32 %v417, 16
      %v526 = vrot.slane %v524, 5
      %v527 = vor.u32 %v523, %v526
      %v528 = vrot.slane %v527, 4
      %v530 = vshll.u32 %v418, 16
      %v532 = vrot.slane %v530, 5
      %v533 = vsel %vm421, %v528, %v532
      %s534 = scalar_lea.vmem %s1, 4
      %v535 = vld [vmem:[%s534] sm:$0x3]
      %v536 = vunpack.c.l.b16 %v435
      %v537 = vunpack.c.l.b16 %v449
      %v538 = vunpack.c.l.b16 %v463
      %v539 = vunpack.c.l.b16 %v477
      %v540 = vunpack.c.l.b16 %v491
      %v541 = vunpack.c.l.b16 %v505
      %v542 = vunpack.c.l.b16 %v519
      %v543 = vunpack.c.l.b16 %v533
      %v544 = vpack.c.b16 %v537, %v536
      %v545 = vpack.c.b16 %v539, %v538
      %v546 = vpack.c.b16 %v541, %v540
      %v547 = vpack.c.b16 %v543, %v542
      %v549 = vsel %vm293, %v544, 0
      %v552 = vsel %vm293, %v545, 0
      %v555 = vsel %vm293, %v546, 0
      %v558 = vsel %vm293, %v547, 0
      %v561 = vsel %vm306, %v535, 0
      %563 = vmatpush.bf16.msra.mxu0 0
      %564 = vmatpush.bf16.msra.mxu0 0
      %565 = vmatpush.bf16.msra.mxu0 0
      %566 = vmatpush.bf16.msra.mxu0 0
      %567 = vmatpush.bf16.msra.mxu0 0
      %568 = vmatpush.bf16.msra.mxu0 0
      %569 = vmatpush.bf16.msra.mxu0 0
      %570 = vmatpush.bf16.msra.mxu0 %v561
      %571 = vmatmul.bf16.gmra.mxu0 %v549
      %v572 = vpop.f32.mrf.mxu0
      %v573 = vadd.f32 0.0, %v572
      %v574 = vpop.f32.mrf.mxu0
      %v575 = vadd.f32 0.0, %v574
      %576 = vmatmul.bf16.gmra.mxu0 %v552
      %v577 = vpop.f32.mrf.mxu0
      %v578 = vadd.f32 0.0, %v577
      %v579 = vpop.f32.mrf.mxu0
      %v580 = vadd.f32 0.0, %v579
      %581 = vmatmul.bf16.gmra.mxu0 %v555
      %v582 = vpop.f32.mrf.mxu0
      %v583 = vadd.f32 0.0, %v582
      %v584 = vpop.f32.mrf.mxu0
      %v585 = vadd.f32 0.0, %v584
      %586 = vmatmul.bf16.gmra.mxu0 %v558
      %v587 = vpop.f32.mrf.mxu0
      %v588 = vadd.f32 0.0, %v587
      %v589 = vpop.f32.mrf.mxu0
      %v590 = vadd.f32 0.0, %v589
      %591 = vdwg.mxu0
      %v592 = vadd.f32 %v384, %v573
      %v593 = vadd.f32 %v386, %v575
      %v594 = vadd.f32 %v389, %v578
      %v595 = vadd.f32 %v391, %v580
      %v596 = vadd.f32 %v394, %v583
      %v597 = vadd.f32 %v396, %v585
      %v598 = vadd.f32 %v399, %v588
      %v599 = vadd.f32 %v401, %v590
      %s600 = scalar_lea.vmem %s246, 144
      %v601 = vld [vmem:[%s600] sm:$0xf]
      %v602 = vld [vmem:[%s600 + $0x8] sm:$0xf]
      %v603 = vld [vmem:[%s600 + $0x10] sm:$0xf]
      %v604 = vld [vmem:[%s600 + $0x18] sm:$0xf]
      %v605 = vld [vmem:[%s600 + $0x20] sm:$0xf]
      %v606 = vld [vmem:[%s600 + $0x28] sm:$0xf]
      %v607 = vld [vmem:[%s600 + $0x30] sm:$0xf]
      %v608 = vld [vmem:[%s600 + $0x38] sm:$0xf]
      %s609 = scalar_lea.vmem %s1, 6
      %v610 = vld [vmem:[%s609] sm:$0x3]
      %v619 = vunpack.c.l.b16 %v601
      %v620 = vunpack.c.l.b16 %v602
      %v621 = vunpack.c.l.b16 %v603
      %v622 = vunpack.c.l.b16 %v604
      %v623 = vunpack.c.l.b16 %v605
      %v624 = vunpack.c.l.b16 %v606
      %v625 = vunpack.c.l.b16 %v607
      %v626 = vunpack.c.l.b16 %v608
      %v627 = vpack.c.b16 %v620, %v619
      %v628 = vpack.c.b16 %v622, %v621
      %v629 = vpack.c.b16 %v624, %v623
      %v630 = vpack.c.b16 %v626, %v625
      %v632 = vsel %vm293, %v627, 0
      %v635 = vsel %vm293, %v628, 0
      %v638 = vsel %vm293, %v629, 0
      %v641 = vsel %vm293, %v630, 0
      %v644 = vsel %vm306, %v610, 0
      %646 = vmatpush.bf16.msra.mxu0 0
      %647 = vmatpush.bf16.msra.mxu0 0
      %648 = vmatpush.bf16.msra.mxu0 0
      %649 = vmatpush.bf16.msra.mxu0 0
      %650 = vmatpush.bf16.msra.mxu0 0
      %651 = vmatpush.bf16.msra.mxu0 0
      %652 = vmatpush.bf16.msra.mxu0 0
      %653 = vmatpush.bf16.msra.mxu0 %v644
      %654 = vmatmul.bf16.gmra.mxu0 %v632
      %v655 = vpop.f32.mrf.mxu0
      %v656 = vadd.f32 0.0, %v655
      %v657 = vpop.f32.mrf.mxu0
      %v658 = vadd.f32 0.0, %v657
      %659 = vmatmul.bf16.gmra.mxu0 %v635
      %v660 = vpop.f32.mrf.mxu0
      %v661 = vadd.f32 0.0, %v660
      %v662 = vpop.f32.mrf.mxu0
      %v663 = vadd.f32 0.0, %v662
      %664 = vmatmul.bf16.gmra.mxu0 %v638
      %v665 = vpop.f32.mrf.mxu0
      %v666 = vadd.f32 0.0, %v665
      %v667 = vpop.f32.mrf.mxu0
      %v668 = vadd.f32 0.0, %v667
      %669 = vmatmul.bf16.gmra.mxu0 %v641
      %v670 = vpop.f32.mrf.mxu0
      %v671 = vadd.f32 0.0, %v670
      %v672 = vpop.f32.mrf.mxu0
      %v673 = vadd.f32 0.0, %v672
      %674 = vdwg.mxu0
      %v675 = vadd.f32 %v592, %v656
      %v676 = vadd.f32 %v593, %v658
      %v677 = vadd.f32 %v594, %v661
      %v678 = vadd.f32 %v595, %v663
      %v679 = vadd.f32 %v596, %v666
      %v680 = vadd.f32 %v597, %v668
      %v681 = vadd.f32 %v598, %v671
      %v682 = vadd.f32 %v599, %v673
      %s683 = scalar_lea.vmem %s246, 216
      %v684 = vld [vmem:[%s683] sm:$0xf]
      %v685 = vld [vmem:[%s683 + $0x8] sm:$0xf]
      %v686 = vld [vmem:[%s683 + $0x10] sm:$0xf]
      %v687 = vld [vmem:[%s683 + $0x18] sm:$0xf]
      %v688 = vld [vmem:[%s683 + $0x20] sm:$0xf]
      %v689 = vld [vmem:[%s683 + $0x28] sm:$0xf]
      %v690 = vld [vmem:[%s683 + $0x30] sm:$0xf]
      %v691 = vld [vmem:[%s683 + $0x38] sm:$0xf]
      %s692 = scalar_lea.vmem %s1, 8
      %v693 = vld [vmem:[%s692] sm:$0x3]
      %v702 = vunpack.c.l.b16 %v684
      %v703 = vunpack.c.l.b16 %v685
      %v704 = vunpack.c.l.b16 %v686
      %v705 = vunpack.c.l.b16 %v687
      %v706 = vunpack.c.l.b16 %v688
      %v707 = vunpack.c.l.b16 %v689
      %v708 = vunpack.c.l.b16 %v690
      %v709 = vunpack.c.l.b16 %v691
      %v710 = vpack.c.b16 %v703, %v702
      %v711 = vpack.c.b16 %v705, %v704
      %v712 = vpack.c.b16 %v707, %v706
      %v713 = vpack.c.b16 %v709, %v708
      %v715 = vsel %vm293, %v710, 0
      %v718 = vsel %vm293, %v711, 0
      %v721 = vsel %vm293, %v712, 0
      %v724 = vsel %vm293, %v713, 0
      %v727 = vsel %vm306, %v693, 0
      %729 = vmatpush.bf16.msra.mxu0 0
      %730 = vmatpush.bf16.msra.mxu0 0
      %731 = vmatpush.bf16.msra.mxu0 0
      %732 = vmatpush.bf16.msra.mxu0 0
      %733 = vmatpush.bf16.msra.mxu0 0
      %734 = vmatpush.bf16.msra.mxu0 0
      %735 = vmatpush.bf16.msra.mxu0 0
      %736 = vmatpush.bf16.msra.mxu0 %v727
      %737 = vmatmul.bf16.gmra.mxu0 %v715
      %v738 = vpop.f32.mrf.mxu0
      %v739 = vadd.f32 0.0, %v738
      %v740 = vpop.f32.mrf.mxu0
      %v741 = vadd.f32 0.0, %v740
      %742 = vmatmul.bf16.gmra.mxu0 %v718
      %v743 = vpop.f32.mrf.mxu0
      %v744 = vadd.f32 0.0, %v743
      %v745 = vpop.f32.mrf.mxu0
      %v746 = vadd.f32 0.0, %v745
      %747 = vmatmul.bf16.gmra.mxu0 %v721
      %v748 = vpop.f32.mrf.mxu0
      %v749 = vadd.f32 0.0, %v748
      %v750 = vpop.f32.mrf.mxu0
      %v751 = vadd.f32 0.0, %v750
      %752 = vmatmul.bf16.gmra.mxu0 %v724
      %v753 = vpop.f32.mrf.mxu0
      %v754 = vadd.f32 0.0, %v753
      %v755 = vpop.f32.mrf.mxu0
      %v756 = vadd.f32 0.0, %v755
      %757 = vdwg.mxu0
      %v758 = vadd.f32 %v675, %v739
      %v759 = vadd.f32 %v676, %v741
      %v760 = vadd.f32 %v677, %v744
      %v761 = vadd.f32 %v678, %v746
      %v762 = vadd.f32 %v679, %v749
      %v763 = vadd.f32 %v680, %v751
      %v764 = vadd.f32 %v681, %v754
      %v765 = vadd.f32 %v682, %v756
      %v766 = vld [vmem:[%s600] sm:$0xf]
      %v767 = vld [vmem:[%s600 + $0x4] sm:$0x1]
      %v768 = vld [vmem:[%s600 + $0x8] sm:$0xf]
      %v769 = vld [vmem:[%s600 + $0xc] sm:$0x1]
      %v770 = vld [vmem:[%s600 + $0x10] sm:$0xf]
      %v771 = vld [vmem:[%s600 + $0x14] sm:$0x1]
      %v772 = vld [vmem:[%s600 + $0x18] sm:$0xf]
      %v773 = vld [vmem:[%s600 + $0x1c] sm:$0x1]
      %v774 = vld [vmem:[%s600 + $0x20] sm:$0xf]
      %v775 = vld [vmem:[%s600 + $0x24] sm:$0x1]
      %v776 = vld [vmem:[%s600 + $0x28] sm:$0xf]
      %v777 = vld [vmem:[%s600 + $0x2c] sm:$0x1]
      %v778 = vld [vmem:[%s600 + $0x30] sm:$0xf]
      %v779 = vld [vmem:[%s600 + $0x34] sm:$0x1]
      %v780 = vld [vmem:[%s600 + $0x38] sm:$0xf]
      %v781 = vld [vmem:[%s600 + $0x3c] sm:$0x1]
      %v783 = vshrl.u32 %v766, 16
      %v785 = vrot.slane %v783, 4
      %v786 = vshll.u32 %v766, 16
      %v788 = vrot.slane %v786, 5
      %v789 = vor.u32 %v785, %v788
      %v790 = vrot.slane %v789, 4
      %v792 = vshll.u32 %v767, 16
      %v794 = vrot.slane %v792, 5
      %v795 = vsel %vm421, %v790, %v794
      %v797 = vshrl.u32 %v768, 16
      %v799 = vrot.slane %v797, 4
      %v800 = vshll.u32 %v768, 16
      %v802 = vrot.slane %v800, 5
      %v803 = vor.u32 %v799, %v802
      %v804 = vrot.slane %v803, 4
      %v806 = vshll.u32 %v769, 16
      %v808 = vrot.slane %v806, 5
      %v809 = vsel %vm421, %v804, %v808
      %v811 = vshrl.u32 %v770, 16
      %v813 = vrot.slane %v811, 4
      %v814 = vshll.u32 %v770, 16
      %v816 = vrot.slane %v814, 5
      %v817 = vor.u32 %v813, %v816
      %v818 = vrot.slane %v817, 4
      %v820 = vshll.u32 %v771, 16
      %v822 = vrot.slane %v820, 5
      %v823 = vsel %vm421, %v818, %v822
      %v825 = vshrl.u32 %v772, 16
      %v827 = vrot.slane %v825, 4
      %v828 = vshll.u32 %v772, 16
      %v830 = vrot.slane %v828, 5
      %v831 = vor.u32 %v827, %v830
      %v832 = vrot.slane %v831, 4
      %v834 = vshll.u32 %v773, 16
      %v836 = vrot.slane %v834, 5
      %v837 = vsel %vm421, %v832, %v836
      %v839 = vshrl.u32 %v774, 16
      %v841 = vrot.slane %v839, 4
      %v842 = vshll.u32 %v774, 16
      %v844 = vrot.slane %v842, 5
      %v845 = vor.u32 %v841, %v844
      %v846 = vrot.slane %v845, 4
      %v848 = vshll.u32 %v775, 16
      %v850 = vrot.slane %v848, 5
      %v851 = vsel %vm421, %v846, %v850
      %v853 = vshrl.u32 %v776, 16
      %v855 = vrot.slane %v853, 4
      %v856 = vshll.u32 %v776, 16
      %v858 = vrot.slane %v856, 5
      %v859 = vor.u32 %v855, %v858
      %v860 = vrot.slane %v859, 4
      %v862 = vshll.u32 %v777, 16
      %v864 = vrot.slane %v862, 5
      %v865 = vsel %vm421, %v860, %v864
      %v867 = vshrl.u32 %v778, 16
      %v869 = vrot.slane %v867, 4
      %v870 = vshll.u32 %v778, 16
      %v872 = vrot.slane %v870, 5
      %v873 = vor.u32 %v869, %v872
      %v874 = vrot.slane %v873, 4
      %v876 = vshll.u32 %v779, 16
      %v878 = vrot.slane %v876, 5
      %v879 = vsel %vm421, %v874, %v878
      %v881 = vshrl.u32 %v780, 16
      %v883 = vrot.slane %v881, 4
      %v884 = vshll.u32 %v780, 16
      %v886 = vrot.slane %v884, 5
      %v887 = vor.u32 %v883, %v886
      %v888 = vrot.slane %v887, 4
      %v890 = vshll.u32 %v781, 16
      %v892 = vrot.slane %v890, 5
      %v893 = vsel %vm421, %v888, %v892
      %s894 = scalar_lea.vmem %s1, 10
      %v895 = vld [vmem:[%s894] sm:$0x3]
      %v896 = vunpack.c.l.b16 %v795
      %v897 = vunpack.c.l.b16 %v809
      %v898 = vunpack.c.l.b16 %v823
      %v899 = vunpack.c.l.b16 %v837
      %v900 = vunpack.c.l.b16 %v851
      %v901 = vunpack.c.l.b16 %v865
      %v902 = vunpack.c.l.b16 %v879
      %v903 = vunpack.c.l.b16 %v893
      %v904 = vpack.c.b16 %v897, %v896
      %v905 = vpack.c.b16 %v899, %v898
      %v906 = vpack.c.b16 %v901, %v900
      %v907 = vpack.c.b16 %v903, %v902
      %v909 = vsel %vm293, %v904, 0
      %v912 = vsel %vm293, %v905, 0
      %v915 = vsel %vm293, %v906, 0
      %v918 = vsel %vm293, %v907, 0
      %v921 = vsel %vm306, %v895, 0
      %923 = vmatpush.bf16.msra.mxu0 0
      %924 = vmatpush.bf16.msra.mxu0 0
      %925 = vmatpush.bf16.msra.mxu0 0
      %926 = vmatpush.bf16.msra.mxu0 0
      %927 = vmatpush.bf16.msra.mxu0 0
      %928 = vmatpush.bf16.msra.mxu0 0
      %929 = vmatpush.bf16.msra.mxu0 0
      %930 = vmatpush.bf16.msra.mxu0 %v921
      %931 = vmatmul.bf16.gmra.mxu0 %v909
      %v932 = vpop.f32.mrf.mxu0
      %v933 = vadd.f32 0.0, %v932
      %v934 = vpop.f32.mrf.mxu0
      %v935 = vadd.f32 0.0, %v934
      %936 = vmatmul.bf16.gmra.mxu0 %v912
      %v937 = vpop.f32.mrf.mxu0
      %v938 = vadd.f32 0.0, %v937
      %v939 = vpop.f32.mrf.mxu0
      %v940 = vadd.f32 0.0, %v939
      %941 = vmatmul.bf16.gmra.mxu0 %v915
      %v942 = vpop.f32.mrf.mxu0
      %v943 = vadd.f32 0.0, %v942
      %v944 = vpop.f32.mrf.mxu0
      %v945 = vadd.f32 0.0, %v944
      %946 = vmatmul.bf16.gmra.mxu0 %v918
      %v947 = vpop.f32.mrf.mxu0
      %v948 = vadd.f32 0.0, %v947
      %v949 = vpop.f32.mrf.mxu0
      %v950 = vadd.f32 0.0, %v949
      %951 = vdwg.mxu0
      %v952 = vadd.f32 %v758, %v933
      %v953 = vadd.f32 %v759, %v935
      %v954 = vadd.f32 %v760, %v938
      %v955 = vadd.f32 %v761, %v940
      %v956 = vadd.f32 %v762, %v943
      %v957 = vadd.f32 %v763, %v945
      %v958 = vadd.f32 %v764, %v948
      %v959 = vadd.f32 %v765, %v950
      %s960 = scalar_lea.vmem %s246, 8
      %v961 = vld [vmem:[%s960] sm:$0xf]
      %v962 = vld [vmem:[%s960 + $0x8] sm:$0xf]
      %v963 = vld [vmem:[%s960 + $0x10] sm:$0xf]
      %v964 = vld [vmem:[%s960 + $0x18] sm:$0xf]
      %v965 = vld [vmem:[%s960 + $0x20] sm:$0xf]
      %v966 = vld [vmem:[%s960 + $0x28] sm:$0xf]
      %v967 = vld [vmem:[%s960 + $0x30] sm:$0xf]
      %v968 = vld [vmem:[%s960 + $0x38] sm:$0xf]
      %s969 = scalar_lea.vmem %s1, 12
      %v970 = vld [vmem:[%s969] sm:$0x3]
      %v979 = vunpack.c.l.b16 %v961
      %v980 = vunpack.c.l.b16 %v962
      %v981 = vunpack.c.l.b16 %v963
      %v982 = vunpack.c.l.b16 %v964
      %v983 = vunpack.c.l.b16 %v965
      %v984 = vunpack.c.l.b16 %v966
      %v985 = vunpack.c.l.b16 %v967
      %v986 = vunpack.c.l.b16 %v968
      %v987 = vpack.c.b16 %v980, %v979
      %v988 = vpack.c.b16 %v982, %v981
      %v989 = vpack.c.b16 %v984, %v983
      %v990 = vpack.c.b16 %v986, %v985
      %v992 = vsel %vm293, %v987, 0
      %v995 = vsel %vm293, %v988, 0
      %v998 = vsel %vm293, %v989, 0
      %v1001 = vsel %vm293, %v990, 0
      %v1004 = vsel %vm306, %v970, 0
      %1006 = vmatpush.bf16.msra.mxu0 0
      %1007 = vmatpush.bf16.msra.mxu0 0
      %1008 = vmatpush.bf16.msra.mxu0 0
      %1009 = vmatpush.bf16.msra.mxu0 0
      %1010 = vmatpush.bf16.msra.mxu0 0
      %1011 = vmatpush.bf16.msra.mxu0 0
      %1012 = vmatpush.bf16.msra.mxu0 0
      %1013 = vmatpush.bf16.msra.mxu0 %v1004
      %1014 = vmatmul.bf16.gmra.mxu0 %v992
      %v1015 = vpop.f32.mrf.mxu0
      %v1016 = vadd.f32 0.0, %v1015
      %v1017 = vpop.f32.mrf.mxu0
      %v1018 = vadd.f32 0.0, %v1017
      %1019 = vmatmul.bf16.gmra.mxu0 %v995
      %v1020 = vpop.f32.mrf.mxu0
      %v1021 = vadd.f32 0.0, %v1020
      %v1022 = vpop.f32.mrf.mxu0
      %v1023 = vadd.f32 0.0, %v1022
      %1024 = vmatmul.bf16.gmra.mxu0 %v998
      %v1025 = vpop.f32.mrf.mxu0
      %v1026 = vadd.f32 0.0, %v1025
      %v1027 = vpop.f32.mrf.mxu0
      %v1028 = vadd.f32 0.0, %v1027
      %1029 = vmatmul.bf16.gmra.mxu0 %v1001
      %v1030 = vpop.f32.mrf.mxu0
      %v1031 = vadd.f32 0.0, %v1030
      %v1032 = vpop.f32.mrf.mxu0
      %v1033 = vadd.f32 0.0, %v1032
      %1034 = vdwg.mxu0
      %v1035 = vadd.f32 %v952, %v1016
      %v1036 = vadd.f32 %v953, %v1018
      %v1037 = vadd.f32 %v954, %v1021
      %v1038 = vadd.f32 %v955, %v1023
      %v1039 = vadd.f32 %v956, %v1026
      %v1040 = vadd.f32 %v957, %v1028
      %v1041 = vadd.f32 %v958, %v1031
      %v1042 = vadd.f32 %v959, %v1033
      %s1043 = scalar_lea.vmem %s246, 80
      %v1044 = vld [vmem:[%s1043] sm:$0xf]
      %v1045 = vld [vmem:[%s1043 + $0x8] sm:$0xf]
      %v1046 = vld [vmem:[%s1043 + $0x10] sm:$0xf]
      %v1047 = vld [vmem:[%s1043 + $0x18] sm:$0xf]
      %v1048 = vld [vmem:[%s1043 + $0x20] sm:$0xf]
      %v1049 = vld [vmem:[%s1043 + $0x28] sm:$0xf]
      %v1050 = vld [vmem:[%s1043 + $0x30] sm:$0xf]
      %v1051 = vld [vmem:[%s1043 + $0x38] sm:$0xf]
      %s1052 = scalar_lea.vmem %s1, 14
      %v1053 = vld [vmem:[%s1052] sm:$0x3]
      %v1062 = vunpack.c.l.b16 %v1044
      %v1063 = vunpack.c.l.b16 %v1045
      %v1064 = vunpack.c.l.b16 %v1046
      %v1065 = vunpack.c.l.b16 %v1047
      %v1066 = vunpack.c.l.b16 %v1048
      %v1067 = vunpack.c.l.b16 %v1049
      %v1068 = vunpack.c.l.b16 %v1050
      %v1069 = vunpack.c.l.b16 %v1051
      %v1070 = vpack.c.b16 %v1063, %v1062
      %v1071 = vpack.c.b16 %v1065, %v1064
      %v1072 = vpack.c.b16 %v1067, %v1066
      %v1073 = vpack.c.b16 %v1069, %v1068
      %v1075 = vsel %vm293, %v1070, 0
      %v1078 = vsel %vm293, %v1071, 0
      %v1081 = vsel %vm293, %v1072, 0
      %v1084 = vsel %vm293, %v1073, 0
      %v1087 = vsel %vm306, %v1053, 0
      %1089 = vmatpush.bf16.msra.mxu0 0
      %1090 = vmatpush.bf16.msra.mxu0 0
      %1091 = vmatpush.bf16.msra.mxu0 0
      %1092 = vmatpush.bf16.msra.mxu0 0
      %1093 = vmatpush.bf16.msra.mxu0 0
      %1094 = vmatpush.bf16.msra.mxu0 0
      %1095 = vmatpush.bf16.msra.mxu0 0
      %1096 = vmatpush.bf16.msra.mxu0 %v1087
      %1097 = vmatmul.bf16.gmra.mxu0 %v1075
      %v1098 = vpop.f32.mrf.mxu0
      %v1099 = vadd.f32 0.0, %v1098
      %v1100 = vpop.f32.mrf.mxu0
      %v1101 = vadd.f32 0.0, %v1100
      %1102 = vmatmul.bf16.gmra.mxu0 %v1078
      %v1103 = vpop.f32.mrf.mxu0
      %v1104 = vadd.f32 0.0, %v1103
      %v1105 = vpop.f32.mrf.mxu0
      %v1106 = vadd.f32 0.0, %v1105
      %1107 = vmatmul.bf16.gmra.mxu0 %v1081
      %v1108 = vpop.f32.mrf.mxu0
      %v1109 = vadd.f32 0.0, %v1108
      %v1110 = vpop.f32.mrf.mxu0
      %v1111 = vadd.f32 0.0, %v1110
      %1112 = vmatmul.bf16.gmra.mxu0 %v1084
      %v1113 = vpop.f32.mrf.mxu0
      %v1114 = vadd.f32 0.0, %v1113
      %v1115 = vpop.f32.mrf.mxu0
      %v1116 = vadd.f32 0.0, %v1115
      %1117 = vdwg.mxu0
      %v1118 = vadd.f32 %v1035, %v1099
      %v1119 = vadd.f32 %v1036, %v1101
      %v1120 = vadd.f32 %v1037, %v1104
      %v1121 = vadd.f32 %v1038, %v1106
      %v1122 = vadd.f32 %v1039, %v1109
      %v1123 = vadd.f32 %v1040, %v1111
      %v1124 = vadd.f32 %v1041, %v1114
      %v1125 = vadd.f32 %v1042, %v1116
      %v1126 = vld [vmem:[%s960] sm:$0xf]
      %v1127 = vld [vmem:[%s960 + $0x4] sm:$0x1]
      %v1128 = vld [vmem:[%s960 + $0x8] sm:$0xf]
      %v1129 = vld [vmem:[%s960 + $0xc] sm:$0x1]
      %v1130 = vld [vmem:[%s960 + $0x10] sm:$0xf]
      %v1131 = vld [vmem:[%s960 + $0x14] sm:$0x1]
      %v1132 = vld [vmem:[%s960 + $0x18] sm:$0xf]
      %v1133 = vld [vmem:[%s960 + $0x1c] sm:$0x1]
      %v1134 = vld [vmem:[%s960 + $0x20] sm:$0xf]
      %v1135 = vld [vmem:[%s960 + $0x24] sm:$0x1]
      %v1136 = vld [vmem:[%s960 + $0x28] sm:$0xf]
      %v1137 = vld [vmem:[%s960 + $0x2c] sm:$0x1]
      %v1138 = vld [vmem:[%s960 + $0x30] sm:$0xf]
      %v1139 = vld [vmem:[%s960 + $0x34] sm:$0x1]
      %v1140 = vld [vmem:[%s960 + $0x38] sm:$0xf]
      %v1141 = vld [vmem:[%s960 + $0x3c] sm:$0x1]
      %v1143 = vshrl.u32 %v1126, 16
      %v1145 = vrot.slane %v1143, 4
      %v1146 = vshll.u32 %v1126, 16
      %v1148 = vrot.slane %v1146, 5
      %v1149 = vor.u32 %v1145, %v1148
      %v1150 = vrot.slane %v1149, 4
      %v1152 = vshll.u32 %v1127, 16
      %v1154 = vrot.slane %v1152, 5
      %v1155 = vsel %vm421, %v1150, %v1154
      %v1157 = vshrl.u32 %v1128, 16
      %v1159 = vrot.slane %v1157, 4
      %v1160 = vshll.u32 %v1128, 16
      %v1162 = vrot.slane %v1160, 5
      %v1163 = vor.u32 %v1159, %v1162
      %v1164 = vrot.slane %v1163, 4
      %v1166 = vshll.u32 %v1129, 16
      %v1168 = vrot.slane %v1166, 5
      %v1169 = vsel %vm421, %v1164, %v1168
      %v1171 = vshrl.u32 %v1130, 16
      %v1173 = vrot.slane %v1171, 4
      %v1174 = vshll.u32 %v1130, 16
      %v1176 = vrot.slane %v1174, 5
      %v1177 = vor.u32 %v1173, %v1176
      %v1178 = vrot.slane %v1177, 4
      %v1180 = vshll.u32 %v1131, 16
      %v1182 = vrot.slane %v1180, 5
      %v1183 = vsel %vm421, %v1178, %v1182
      %v1185 = vshrl.u32 %v1132, 16
      %v1187 = vrot.slane %v1185, 4
      %v1188 = vshll.u32 %v1132, 16
      %v1190 = vrot.slane %v1188, 5
      %v1191 = vor.u32 %v1187, %v1190
      %v1192 = vrot.slane %v1191, 4
      %v1194 = vshll.u32 %v1133, 16
      %v1196 = vrot.slane %v1194, 5
      %v1197 = vsel %vm421, %v1192, %v1196
      %v1199 = vshrl.u32 %v1134, 16
      %v1201 = vrot.slane %v1199, 4
      %v1202 = vshll.u32 %v1134, 16
      %v1204 = vrot.slane %v1202, 5
      %v1205 = vor.u32 %v1201, %v1204
      %v1206 = vrot.slane %v1205, 4
      %v1208 = vshll.u32 %v1135, 16
      %v1210 = vrot.slane %v1208, 5
      %v1211 = vsel %vm421, %v1206, %v1210
      %v1213 = vshrl.u32 %v1136, 16
      %v1215 = vrot.slane %v1213, 4
      %v1216 = vshll.u32 %v1136, 16
      %v1218 = vrot.slane %v1216, 5
      %v1219 = vor.u32 %v1215, %v1218
      %v1220 = vrot.slane %v1219, 4
      %v1222 = vshll.u32 %v1137, 16
      %v1224 = vrot.slane %v1222, 5
      %v1225 = vsel %vm421, %v1220, %v1224
      %v1227 = vshrl.u32 %v1138, 16
      %v1229 = vrot.slane %v1227, 4
      %v1230 = vshll.u32 %v1138, 16
      %v1232 = vrot.slane %v1230, 5
      %v1233 = vor.u32 %v1229, %v1232
      %v1234 = vrot.slane %v1233, 4
      %v1236 = vshll.u32 %v1139, 16
      %v1238 = vrot.slane %v1236, 5
      %v1239 = vsel %vm421, %v1234, %v1238
      %v1241 = vshrl.u32 %v1140, 16
      %v1243 = vrot.slane %v1241, 4
      %v1244 = vshll.u32 %v1140, 16
      %v1246 = vrot.slane %v1244, 5
      %v1247 = vor.u32 %v1243, %v1246
      %v1248 = vrot.slane %v1247, 4
      %v1250 = vshll.u32 %v1141, 16
      %v1252 = vrot.slane %v1250, 5
      %v1253 = vsel %vm421, %v1248, %v1252
      %s1254 = scalar_lea.vmem %s1, 16
      %v1255 = vld [vmem:[%s1254] sm:$0x3]
      %v1256 = vunpack.c.l.b16 %v1155
      %v1257 = vunpack.c.l.b16 %v1169
      %v1258 = vunpack.c.l.b16 %v1183
      %v1259 = vunpack.c.l.b16 %v1197
      %v1260 = vunpack.c.l.b16 %v1211
      %v1261 = vunpack.c.l.b16 %v1225
      %v1262 = vunpack.c.l.b16 %v1239
      %v1263 = vunpack.c.l.b16 %v1253
      %v1264 = vpack.c.b16 %v1257, %v1256
      %v1265 = vpack.c.b16 %v1259, %v1258
      %v1266 = vpack.c.b16 %v1261, %v1260
      %v1267 = vpack.c.b16 %v1263, %v1262
      %v1269 = vsel %vm293, %v1264, 0
      %v1272 = vsel %vm293, %v1265, 0
      %v1275 = vsel %vm293, %v1266, 0
      %v1278 = vsel %vm293, %v1267, 0
      %v1281 = vsel %vm306, %v1255, 0
      %1283 = vmatpush.bf16.msra.mxu0 0
      %1284 = vmatpush.bf16.msra.mxu0 0
      %1285 = vmatpush.bf16.msra.mxu0 0
      %1286 = vmatpush.bf16.msra.mxu0 0
      %1287 = vmatpush.bf16.msra.mxu0 0
      %1288 = vmatpush.bf16.msra.mxu0 0
      %1289 = vmatpush.bf16.msra.mxu0 0
      %1290 = vmatpush.bf16.msra.mxu0 %v1281
      %1291 = vmatmul.bf16.gmra.mxu0 %v1269
      %v1292 = vpop.f32.mrf.mxu0
      %v1293 = vadd.f32 0.0, %v1292
      %v1294 = vpop.f32.mrf.mxu0
      %v1295 = vadd.f32 0.0, %v1294
      %1296 = vmatmul.bf16.gmra.mxu0 %v1272
      %v1297 = vpop.f32.mrf.mxu0
      %v1298 = vadd.f32 0.0, %v1297
      %v1299 = vpop.f32.mrf.mxu0
      %v1300 = vadd.f32 0.0, %v1299
      %1301 = vmatmul.bf16.gmra.mxu0 %v1275
      %v1302 = vpop.f32.mrf.mxu0
      %v1303 = vadd.f32 0.0, %v1302
      %v1304 = vpop.f32.mrf.mxu0
      %v1305 = vadd.f32 0.0, %v1304
      %1306 = vmatmul.bf16.gmra.mxu0 %v1278
      %v1307 = vpop.f32.mrf.mxu0
      %v1308 = vadd.f32 0.0, %v1307
      %v1309 = vpop.f32.mrf.mxu0
      %v1310 = vadd.f32 0.0, %v1309
      %1311 = vdwg.mxu0
      %v1312 = vadd.f32 %v1118, %v1293
      %v1313 = vadd.f32 %v1119, %v1295
      %v1314 = vadd.f32 %v1120, %v1298
      %v1315 = vadd.f32 %v1121, %v1300
      %v1316 = vadd.f32 %v1122, %v1303
      %v1317 = vadd.f32 %v1123, %v1305
      %v1318 = vadd.f32 %v1124, %v1308
      %v1319 = vadd.f32 %v1125, %v1310
      %v1320 = vld [vmem:[%s2] sm:$0x1]
      %v1322 = vperm.slane %v1320, 0
      %v1324 = vadd.f32 %v1312, %v1322
      %v1325 = vadd.f32 %v1313, %v1322
      %v1326 = vadd.f32 %v1314, %v1322
      %v1327 = vadd.f32 %v1315, %v1322
      %v1328 = vadd.f32 %v1316, %v1322
      %v1329 = vadd.f32 %v1317, %v1322
      %v1330 = vadd.f32 %v1318, %v1322
      %v1331 = vadd.f32 %v1319, %v1322
      %v1332 = vmax.f32 %v1324, 0.0
      %v1333 = vmax.f32 %v1325, 0.0
      %v1334 = vmax.f32 %v1326, 0.0
      %v1335 = vmax.f32 %v1327, 0.0
      %v1336 = vmax.f32 %v1328, 0.0
      %v1337 = vmax.f32 %v1329, 0.0
      %v1338 = vmax.f32 %v1330, 0.0
      %v1339 = vmax.f32 %v1331, 0.0
      %1340 = vst [vmem:[#allocation2] sm:$0xff] 0.0
      %1341 = vst [vmem:[#allocation2 + $0x8] sm:$0x3] 0.0
      %1342 = vst [vmem:[#allocation2 + $0x10] sm:$0xff] 0.0
      %1343 = vst [vmem:[#allocation2 + $0x18] sm:$0x3] 0.0
      %1344 = vst [vmem:[#allocation2 + $0x20] sm:$0xff] 0.0
      %1345 = vst [vmem:[#allocation2 + $0x28] sm:$0x3] 0.0
      %1346 = vst [vmem:[#allocation2 + $0x30] sm:$0xff] 0.0
      %1347 = vst [vmem:[#allocation2 + $0x38] sm:$0x3] 0.0
      %1348 = vst [vmem:[#allocation2 + $0x40] sm:$0xff] 0.0
      %1349 = vst [vmem:[#allocation2 + $0x48] sm:$0x3] 0.0
      %1350 = vst [vmem:[#allocation2 + $0x50] sm:$0xff] 0.0
      %1351 = vst [vmem:[#allocation2 + $0x58] sm:$0x3] 0.0
      %1352 = vst [vmem:[#allocation2 + $0x60] sm:$0xff] 0.0
      %1353 = vst [vmem:[#allocation2 + $0x68] sm:$0x3] 0.0
      %1354 = vst [vmem:[#allocation2 + $0x70] sm:$0xff] 0.0
      %1355 = vst [vmem:[#allocation2 + $0x78] sm:$0x3] 0.0
      %1356 = vst [vmem:[#allocation2 + $0x80] sm:$0xff] 0.0
      %1357 = vst [vmem:[#allocation2 + $0x88] sm:$0x3] 0.0
      %1358 = vst [vmem:[#allocation2 + $0x90] sm:$0xff] 0.0
      %1359 = vst [vmem:[#allocation2 + $0x98] sm:$0x3] 0.0
      %s1360 = scalar_lea.vmem [#allocation2], 16
      %1361 = vst [vmem:[%s1360 + $0x1] sm:$0xff] %v1332
      %1362 = vst [vmem:[%s1360 + $0x11] sm:$0xff] %v1333
      %1363 = vst [vmem:[%s1360 + $0x21] sm:$0xff] %v1334
      %1364 = vst [vmem:[%s1360 + $0x31] sm:$0xff] %v1335
      %1365 = vst [vmem:[%s1360 + $0x41] sm:$0xff] %v1336
      %1366 = vst [vmem:[%s1360 + $0x51] sm:$0xff] %v1337
      %1367 = vst [vmem:[%s1360 + $0x61] sm:$0xff] %v1338
      %1368 = vst [vmem:[%s1360 + $0x71] sm:$0xff] %v1339
      %v1369 = vld [vmem:[#allocation2] sm:$0xff]
      %v1370 = vld [vmem:[#allocation2 + $0x10] sm:$0xff]
      %v1371 = vld [vmem:[#allocation2 + $0x20] sm:$0xff]
      %v1372 = vld [vmem:[#allocation2 + $0x30] sm:$0xff]
      %v1373 = vld [vmem:[#allocation2 + $0x40] sm:$0xff]
      %v1374 = vld [vmem:[#allocation2 + $0x50] sm:$0xff]
      %v1375 = vld [vmem:[#allocation2 + $0x60] sm:$0xff]
      %v1376 = vld [vmem:[#allocation2 + $0x70] sm:$0xff]
      %v1377 = vpack.c.bf16 %v1369, %v1369
      %v1378 = vpack.c.bf16 %v1370, %v1370
      %v1379 = vpack.c.bf16 %v1371, %v1371
      %v1380 = vpack.c.bf16 %v1372, %v1372
      %v1381 = vpack.c.bf16 %v1373, %v1373
      %v1382 = vpack.c.bf16 %v1374, %v1374
      %v1383 = vpack.c.bf16 %v1375, %v1375
      %v1384 = vpack.c.bf16 %v1376, %v1376
      %v1385 = vld [vmem:[%s3] sm:$0xf]
      %v1386 = vld [vmem:[%s3 + $0x4] sm:$0xf]
      %v1387 = vld [vmem:[%s3 + $0x8] sm:$0xf]
      %v1388 = vld [vmem:[%s3 + $0xc] sm:$0xf]
      %v1389 = vld [vmem:[%s3 + $0x10] sm:$0xf]
      %v1390 = vld [vmem:[%s3 + $0x14] sm:$0xf]
      %v1391 = vld [vmem:[%s3 + $0x18] sm:$0xf]
      %v1392 = vld [vmem:[%s3 + $0x1c] sm:$0xf]
      %v1393 = vld [vmem:[%s3 + $0x20] sm:$0xf]
      %v1394 = vld [vmem:[%s3 + $0x24] sm:$0xf]
      %v1395 = vld [vmem:[%s3 + $0x28] sm:$0xf]
      %v1396 = vld [vmem:[%s3 + $0x2c] sm:$0xf]
      %v1397 = vld [vmem:[%s3 + $0x30] sm:$0xf]
      %v1398 = vld [vmem:[%s3 + $0x34] sm:$0xf]
      %v1399 = vld [vmem:[%s3 + $0x38] sm:$0xf]
      %v1400 = vld [vmem:[%s3 + $0x3c] sm:$0xf]
      %v1401 = vld [vmem:[#allocation2 + $0x1] sm:$0xff]
      %v1402 = vld [vmem:[#allocation2 + $0x11] sm:$0xff]
      %v1403 = vld [vmem:[#allocation2 + $0x21] sm:$0xff]
      %v1404 = vld [vmem:[#allocation2 + $0x31] sm:$0xff]
      %v1405 = vld [vmem:[#allocation2 + $0x41] sm:$0xff]
      %v1406 = vld [vmem:[#allocation2 + $0x51] sm:$0xff]
      %v1407 = vld [vmem:[#allocation2 + $0x61] sm:$0xff]
      %v1408 = vld [vmem:[#allocation2 + $0x71] sm:$0xff]
      %v1409 = vpack.c.bf16 %v1401, %v1401
      %v1410 = vpack.c.bf16 %v1402, %v1402
      %v1411 = vpack.c.bf16 %v1403, %v1403
      %v1412 = vpack.c.bf16 %v1404, %v1404
      %v1413 = vpack.c.bf16 %v1405, %v1405
      %v1414 = vpack.c.bf16 %v1406, %v1406
      %v1415 = vpack.c.bf16 %v1407, %v1407
      %v1416 = vpack.c.bf16 %v1408, %v1408
      %s1417 = scalar_lea.vmem %s3, 64
      %v1418 = vld [vmem:[%s1417] sm:$0xf]
      %v1419 = vld [vmem:[%s1417 + $0x4] sm:$0xf]
      %v1420 = vld [vmem:[%s1417 + $0x8] sm:$0xf]
      %v1421 = vld [vmem:[%s1417 + $0xc] sm:$0xf]
      %v1422 = vld [vmem:[%s1417 + $0x10] sm:$0xf]
      %v1423 = vld [vmem:[%s1417 + $0x14] sm:$0xf]
      %v1424 = vld [vmem:[%s1417 + $0x18] sm:$0xf]
      %v1425 = vld [vmem:[%s1417 + $0x1c] sm:$0xf]
      %v1426 = vld [vmem:[%s1417 + $0x20] sm:$0xf]
      %v1427 = vld [vmem:[%s1417 + $0x24] sm:$0xf]
      %v1428 = vld [vmem:[%s1417 + $0x28] sm:$0xf]
      %v1429 = vld [vmem:[%s1417 + $0x2c] sm:$0xf]
      %v1430 = vld [vmem:[%s1417 + $0x30] sm:$0xf]
      %v1431 = vld [vmem:[%s1417 + $0x34] sm:$0xf]
      %v1432 = vld [vmem:[%s1417 + $0x38] sm:$0xf]
      %v1433 = vld [vmem:[%s1417 + $0x3c] sm:$0xf]
      %v1442 = vunpack.c.l.b16 %v1409
      %v1443 = vunpack.c.l.b16 %v1410
      %v1444 = vunpack.c.l.b16 %v1411
      %v1445 = vunpack.c.l.b16 %v1412
      %v1446 = vunpack.c.l.b16 %v1413
      %v1447 = vunpack.c.l.b16 %v1414
      %v1448 = vunpack.c.l.b16 %v1415
      %v1449 = vunpack.c.l.b16 %v1416
      %v1450 = vpack.c.b16 %v1443, %v1442
      %v1451 = vpack.c.b16 %v1445, %v1444
      %v1452 = vpack.c.b16 %v1447, %v1446
      %v1453 = vpack.c.b16 %v1449, %v1448
      %v1474 = vunpack.c.l.b16 %v1418
      %v1475 = vunpack.c.l.b16 %v1419
      %v1476 = vunpack.c.l.b16 %v1420
      %v1477 = vunpack.c.l.b16 %v1421
      %v1478 = vunpack.c.l.b16 %v1422
      %v1479 = vunpack.c.l.b16 %v1423
      %v1480 = vunpack.c.l.b16 %v1424
      %v1481 = vunpack.c.l.b16 %v1425
      %v1482 = vunpack.c.l.b16 %v1426
      %v1483 = vunpack.c.l.b16 %v1427
      %v1484 = vunpack.c.l.b16 %v1428
      %v1485 = vunpack.c.l.b16 %v1429
      %v1486 = vunpack.c.l.b16 %v1430
      %v1487 = vunpack.c.l.b16 %v1431
      %v1488 = vunpack.c.l.b16 %v1432
      %v1489 = vunpack.c.l.b16 %v1433
      %v1490 = vpack.c.b16 %v1475, %v1474
      %v1491 = vpack.c.b16 %v1477, %v1476
      %v1492 = vpack.c.b16 %v1479, %v1478
      %v1493 = vpack.c.b16 %v1481, %v1480
      %v1494 = vpack.c.b16 %v1483, %v1482
      %v1495 = vpack.c.b16 %v1485, %v1484
      %v1496 = vpack.c.b16 %v1487, %v1486
      %v1497 = vpack.c.b16 %v1489, %v1488
      %1506 = vmatpush.bf16.msra.mxu0 %v1497
      %1507 = vmatpush.bf16.msra.mxu0 %v1496
      %1508 = vmatpush.bf16.msra.mxu0 %v1495
      %1509 = vmatpush.bf16.msra.mxu0 %v1494
      %1510 = vmatpush.bf16.msra.mxu0 %v1493
      %1511 = vmatpush.bf16.msra.mxu0 %v1492
      %1512 = vmatpush.bf16.msra.mxu0 %v1491
      %1513 = vmatpush.bf16.msra.mxu0 %v1490
      %1514 = vmatmul.bf16.gmra.mxu0 %v1450
      %v1515 = vpop.f32.mrf.mxu0
      %v1516 = vadd.f32 0.0, %v1515
      %v1517 = vpop.f32.mrf.mxu0
      %v1518 = vadd.f32 0.0, %v1517
      %1519 = vmatmul.bf16.gmra.mxu0 %v1451
      %v1520 = vpop.f32.mrf.mxu0
      %v1521 = vadd.f32 0.0, %v1520
      %v1522 = vpop.f32.mrf.mxu0
      %v1523 = vadd.f32 0.0, %v1522
      %1524 = vmatmul.bf16.gmra.mxu0 %v1452
      %v1525 = vpop.f32.mrf.mxu0
      %v1526 = vadd.f32 0.0, %v1525
      %v1527 = vpop.f32.mrf.mxu0
      %v1528 = vadd.f32 0.0, %v1527
      %1529 = vmatmul.bf16.gmra.mxu0 %v1453
      %v1530 = vpop.f32.mrf.mxu0
      %v1531 = vadd.f32 0.0, %v1530
      %v1532 = vpop.f32.mrf.mxu0
      %v1533 = vadd.f32 0.0, %v1532
      %1534 = vdwg.mxu0
      %v1543 = vunpack.c.l.b16 %v1377
      %v1544 = vunpack.c.l.b16 %v1378
      %v1545 = vunpack.c.l.b16 %v1379
      %v1546 = vunpack.c.l.b16 %v1380
      %v1547 = vunpack.c.l.b16 %v1381
      %v1548 = vunpack.c.l.b16 %v1382
      %v1549 = vunpack.c.l.b16 %v1383
      %v1550 = vunpack.c.l.b16 %v1384
      %v1551 = vpack.c.b16 %v1544, %v1543
      %v1552 = vpack.c.b16 %v1546, %v1545
      %v1553 = vpack.c.b16 %v1548, %v1547
      %v1554 = vpack.c.b16 %v1550, %v1549
      %v1575 = vunpack.c.l.b16 %v1385
      %v1576 = vunpack.c.l.b16 %v1386
      %v1577 = vunpack.c.l.b16 %v1387
      %v1578 = vunpack.c.l.b16 %v1388
      %v1579 = vunpack.c.l.b16 %v1389
      %v1580 = vunpack.c.l.b16 %v1390
      %v1581 = vunpack.c.l.b16 %v1391
      %v1582 = vunpack.c.l.b16 %v1392
      %v1583 = vunpack.c.l.b16 %v1393
      %v1584 = vunpack.c.l.b16 %v1394
      %v1585 = vunpack.c.l.b16 %v1395
      %v1586 = vunpack.c.l.b16 %v1396
      %v1587 = vunpack.c.l.b16 %v1397
      %v1588 = vunpack.c.l.b16 %v1398
      %v1589 = vunpack.c.l.b16 %v1399
      %v1590 = vunpack.c.l.b16 %v1400
      %v1591 = vpack.c.b16 %v1576, %v1575
      %v1592 = vpack.c.b16 %v1578, %v1577
      %v1593 = vpack.c.b16 %v1580, %v1579
      %v1594 = vpack.c.b16 %v1582, %v1581
      %v1595 = vpack.c.b16 %v1584, %v1583
      %v1596 = vpack.c.b16 %v1586, %v1585
      %v1597 = vpack.c.b16 %v1588, %v1587
      %v1598 = vpack.c.b16 %v1590, %v1589
      %1607 = vmatpush.bf16.msra.mxu0 %v1598
      %1608 = vmatpush.bf16.msra.mxu0 %v1597
      %1609 = vmatpush.bf16.msra.mxu0 %v1596
      %1610 = vmatpush.bf16.msra.mxu0 %v1595
      %1611 = vmatpush.bf16.msra.mxu0 %v1594
      %1612 = vmatpush.bf16.msra.mxu0 %v1593
      %1613 = vmatpush.bf16.msra.mxu0 %v1592
      %1614 = vmatpush.bf16.msra.mxu0 %v1591
      %1615 = vmatmul.bf16.gmra.mxu0 %v1551
      %v1616 = vpop.f32.mrf.mxu0
      %v1617 = vadd.f32 %v1516, %v1616
      %v1618 = vpop.f32.mrf.mxu0
      %v1619 = vadd.f32 %v1518, %v1618
      %1620 = vmatmul.bf16.gmra.mxu0 %v1552
      %v1621 = vpop.f32.mrf.mxu0
      %v1622 = vadd.f32 %v1521, %v1621
      %v1623 = vpop.f32.mrf.mxu0
      %v1624 = vadd.f32 %v1523, %v1623
      %1625 = vmatmul.bf16.gmra.mxu0 %v1553
      %v1626 = vpop.f32.mrf.mxu0
      %v1627 = vadd.f32 %v1526, %v1626
      %v1628 = vpop.f32.mrf.mxu0
      %v1629 = vadd.f32 %v1528, %v1628
      %1630 = vmatmul.bf16.gmra.mxu0 %v1554
      %v1631 = vpop.f32.mrf.mxu0
      %v1632 = vadd.f32 %v1531, %v1631
      %v1633 = vpop.f32.mrf.mxu0
      %v1634 = vadd.f32 %v1533, %v1633
      %1635 = vdwg.mxu0
      %v1636 = vld [vmem:[#allocation2 + $0x2] sm:$0xff]
      %v1637 = vld [vmem:[#allocation2 + $0x12] sm:$0xff]
      %v1638 = vld [vmem:[#allocation2 + $0x22] sm:$0xff]
      %v1639 = vld [vmem:[#allocation2 + $0x32] sm:$0xff]
      %v1640 = vld [vmem:[#allocation2 + $0x42] sm:$0xff]
      %v1641 = vld [vmem:[#allocation2 + $0x52] sm:$0xff]
      %v1642 = vld [vmem:[#allocation2 + $0x62] sm:$0xff]
      %v1643 = vld [vmem:[#allocation2 + $0x72] sm:$0xff]
      %v1644 = vpack.c.bf16 %v1636, %v1636
      %v1645 = vpack.c.bf16 %v1637, %v1637
      %v1646 = vpack.c.bf16 %v1638, %v1638
      %v1647 = vpack.c.bf16 %v1639, %v1639
      %v1648 = vpack.c.bf16 %v1640, %v1640
      %v1649 = vpack.c.bf16 %v1641, %v1641
      %v1650 = vpack.c.bf16 %v1642, %v1642
      %v1651 = vpack.c.bf16 %v1643, %v1643
      %s1652 = scalar_lea.vmem %s3, 128
      %v1653 = vld [vmem:[%s1652] sm:$0xf]
      %v1654 = vld [vmem:[%s1652 + $0x4] sm:$0xf]
      %v1655 = vld [vmem:[%s1652 + $0x8] sm:$0xf]
      %v1656 = vld [vmem:[%s1652 + $0xc] sm:$0xf]
      %v1657 = vld [vmem:[%s1652 + $0x10] sm:$0xf]
      %v1658 = vld [vmem:[%s1652 + $0x14] sm:$0xf]
      %v1659 = vld [vmem:[%s1652 + $0x18] sm:$0xf]
      %v1660 = vld [vmem:[%s1652 + $0x1c] sm:$0xf]
      %v1661 = vld [vmem:[%s1652 + $0x20] sm:$0xf]
      %v1662 = vld [vmem:[%s1652 + $0x24] sm:$0xf]
      %v1663 = vld [vmem:[%s1652 + $0x28] sm:$0xf]
      %v1664 = vld [vmem:[%s1652 + $0x2c] sm:$0xf]
      %v1665 = vld [vmem:[%s1652 + $0x30] sm:$0xf]
      %v1666 = vld [vmem:[%s1652 + $0x34] sm:$0xf]
      %v1667 = vld [vmem:[%s1652 + $0x38] sm:$0xf]
      %v1668 = vld [vmem:[%s1652 + $0x3c] sm:$0xf]
      %v1677 = vunpack.c.l.b16 %v1644
      %v1678 = vunpack.c.l.b16 %v1645
      %v1679 = vunpack.c.l.b16 %v1646
      %v1680 = vunpack.c.l.b16 %v1647
      %v1681 = vunpack.c.l.b16 %v1648
      %v1682 = vunpack.c.l.b16 %v1649
      %v1683 = vunpack.c.l.b16 %v1650
      %v1684 = vunpack.c.l.b16 %v1651
      %v1685 = vpack.c.b16 %v1678, %v1677
      %v1686 = vpack.c.b16 %v1680, %v1679
      %v1687 = vpack.c.b16 %v1682, %v1681
      %v1688 = vpack.c.b16 %v1684, %v1683
      %v1709 = vunpack.c.l.b16 %v1653
      %v1710 = vunpack.c.l.b16 %v1654
      %v1711 = vunpack.c.l.b16 %v1655
      %v1712 = vunpack.c.l.b16 %v1656
      %v1713 = vunpack.c.l.b16 %v1657
      %v1714 = vunpack.c.l.b16 %v1658
      %v1715 = vunpack.c.l.b16 %v1659
      %v1716 = vunpack.c.l.b16 %v1660
      %v1717 = vunpack.c.l.b16 %v1661
      %v1718 = vunpack.c.l.b16 %v1662
      %v1719 = vunpack.c.l.b16 %v1663
      %v1720 = vunpack.c.l.b16 %v1664
      %v1721 = vunpack.c.l.b16 %v1665
      %v1722 = vunpack.c.l.b16 %v1666
      %v1723 = vunpack.c.l.b16 %v1667
      %v1724 = vunpack.c.l.b16 %v1668
      %v1725 = vpack.c.b16 %v1710, %v1709
      %v1726 = vpack.c.b16 %v1712, %v1711
      %v1727 = vpack.c.b16 %v1714, %v1713
      %v1728 = vpack.c.b16 %v1716, %v1715
      %v1729 = vpack.c.b16 %v1718, %v1717
      %v1730 = vpack.c.b16 %v1720, %v1719
      %v1731 = vpack.c.b16 %v1722, %v1721
      %v1732 = vpack.c.b16 %v1724, %v1723
      %1741 = vmatpush.bf16.msra.mxu0 %v1732
      %1742 = vmatpush.bf16.msra.mxu0 %v1731
      %1743 = vmatpush.bf16.msra.mxu0 %v1730
      %1744 = vmatpush.bf16.msra.mxu0 %v1729
      %1745 = vmatpush.bf16.msra.mxu0 %v1728
      %1746 = vmatpush.bf16.msra.mxu0 %v1727
      %1747 = vmatpush.bf16.msra.mxu0 %v1726
      %1748 = vmatpush.bf16.msra.mxu0 %v1725
      %1749 = vmatmul.bf16.gmra.mxu0 %v1685
      %v1750 = vpop.f32.mrf.mxu0
      %v1751 = vadd.f32 0.0, %v1750
      %v1752 = vpop.f32.mrf.mxu0
      %v1753 = vadd.f32 0.0, %v1752
      %1754 = vmatmul.bf16.gmra.mxu0 %v1686
      %v1755 = vpop.f32.mrf.mxu0
      %v1756 = vadd.f32 0.0, %v1755
      %v1757 = vpop.f32.mrf.mxu0
      %v1758 = vadd.f32 0.0, %v1757
      %1759 = vmatmul.bf16.gmra.mxu0 %v1687
      %v1760 = vpop.f32.mrf.mxu0
      %v1761 = vadd.f32 0.0, %v1760
      %v1762 = vpop.f32.mrf.mxu0
      %v1763 = vadd.f32 0.0, %v1762
      %1764 = vmatmul.bf16.gmra.mxu0 %v1688
      %v1765 = vpop.f32.mrf.mxu0
      %v1766 = vadd.f32 0.0, %v1765
      %v1767 = vpop.f32.mrf.mxu0
      %v1768 = vadd.f32 0.0, %v1767
      %1769 = vdwg.mxu0
      %v1770 = vadd.f32 %v1617, %v1751
      %v1771 = vadd.f32 %v1619, %v1753
      %v1772 = vadd.f32 %v1622, %v1756
      %v1773 = vadd.f32 %v1624, %v1758
      %v1774 = vadd.f32 %v1627, %v1761
      %v1775 = vadd.f32 %v1629, %v1763
      %v1776 = vadd.f32 %v1632, %v1766
      %v1777 = vadd.f32 %v1634, %v1768
      %v1778 = vld [vmem:[%s1360] sm:$0xff]
      %v1779 = vld [vmem:[%s1360 + $0x10] sm:$0xff]
      %v1780 = vld [vmem:[%s1360 + $0x20] sm:$0xff]
      %v1781 = vld [vmem:[%s1360 + $0x30] sm:$0xff]
      %v1782 = vld [vmem:[%s1360 + $0x40] sm:$0xff]
      %v1783 = vld [vmem:[%s1360 + $0x50] sm:$0xff]
      %v1784 = vld [vmem:[%s1360 + $0x60] sm:$0xff]
      %v1785 = vld [vmem:[%s1360 + $0x70] sm:$0xff]
      %v1786 = vpack.c.bf16 %v1778, %v1778
      %v1787 = vpack.c.bf16 %v1779, %v1779
      %v1788 = vpack.c.bf16 %v1780, %v1780
      %v1789 = vpack.c.bf16 %v1781, %v1781
      %v1790 = vpack.c.bf16 %v1782, %v1782
      %v1791 = vpack.c.bf16 %v1783, %v1783
      %v1792 = vpack.c.bf16 %v1784, %v1784
      %v1793 = vpack.c.bf16 %v1785, %v1785
      %s1794 = scalar_lea.vmem %s3, 192
      %v1795 = vld [vmem:[%s1794] sm:$0xf]
      %v1796 = vld [vmem:[%s1794 + $0x4] sm:$0xf]
      %v1797 = vld [vmem:[%s1794 + $0x8] sm:$0xf]
      %v1798 = vld [vmem:[%s1794 + $0xc] sm:$0xf]
      %v1799 = vld [vmem:[%s1794 + $0x10] sm:$0xf]
      %v1800 = vld [vmem:[%s1794 + $0x14] sm:$0xf]
      %v1801 = vld [vmem:[%s1794 + $0x18] sm:$0xf]
      %v1802 = vld [vmem:[%s1794 + $0x1c] sm:$0xf]
      %v1803 = vld [vmem:[%s1794 + $0x20] sm:$0xf]
      %v1804 = vld [vmem:[%s1794 + $0x24] sm:$0xf]
      %v1805 = vld [vmem:[%s1794 + $0x28] sm:$0xf]
      %v1806 = vld [vmem:[%s1794 + $0x2c] sm:$0xf]
      %v1807 = vld [vmem:[%s1794 + $0x30] sm:$0xf]
      %v1808 = vld [vmem:[%s1794 + $0x34] sm:$0xf]
      %v1809 = vld [vmem:[%s1794 + $0x38] sm:$0xf]
      %v1810 = vld [vmem:[%s1794 + $0x3c] sm:$0xf]
      %v1819 = vunpack.c.l.b16 %v1786
      %v1820 = vunpack.c.l.b16 %v1787
      %v1821 = vunpack.c.l.b16 %v1788
      %v1822 = vunpack.c.l.b16 %v1789
      %v1823 = vunpack.c.l.b16 %v1790
      %v1824 = vunpack.c.l.b16 %v1791
      %v1825 = vunpack.c.l.b16 %v1792
      %v1826 = vunpack.c.l.b16 %v1793
      %v1827 = vpack.c.b16 %v1820, %v1819
      %v1828 = vpack.c.b16 %v1822, %v1821
      %v1829 = vpack.c.b16 %v1824, %v1823
      %v1830 = vpack.c.b16 %v1826, %v1825
      %v1851 = vunpack.c.l.b16 %v1795
      %v1852 = vunpack.c.l.b16 %v1796
      %v1853 = vunpack.c.l.b16 %v1797
      %v1854 = vunpack.c.l.b16 %v1798
      %v1855 = vunpack.c.l.b16 %v1799
      %v1856 = vunpack.c.l.b16 %v1800
      %v1857 = vunpack.c.l.b16 %v1801
      %v1858 = vunpack.c.l.b16 %v1802
      %v1859 = vunpack.c.l.b16 %v1803
      %v1860 = vunpack.c.l.b16 %v1804
      %v1861 = vunpack.c.l.b16 %v1805
      %v1862 = vunpack.c.l.b16 %v1806
      %v1863 = vunpack.c.l.b16 %v1807
      %v1864 = vunpack.c.l.b16 %v1808
      %v1865 = vunpack.c.l.b16 %v1809
      %v1866 = vunpack.c.l.b16 %v1810
      %v1867 = vpack.c.b16 %v1852, %v1851
      %v1868 = vpack.c.b16 %v1854, %v1853
      %v1869 = vpack.c.b16 %v1856, %v1855
      %v1870 = vpack.c.b16 %v1858, %v1857
      %v1871 = vpack.c.b16 %v1860, %v1859
      %v1872 = vpack.c.b16 %v1862, %v1861
      %v1873 = vpack.c.b16 %v1864, %v1863
      %v1874 = vpack.c.b16 %v1866, %v1865
      %1883 = vmatpush.bf16.msra.mxu0 %v1874
      %1884 = vmatpush.bf16.msra.mxu0 %v1873
      %1885 = vmatpush.bf16.msra.mxu0 %v1872
      %1886 = vmatpush.bf16.msra.mxu0 %v1871
      %1887 = vmatpush.bf16.msra.mxu0 %v1870
      %1888 = vmatpush.bf16.msra.mxu0 %v1869
      %1889 = vmatpush.bf16.msra.mxu0 %v1868
      %1890 = vmatpush.bf16.msra.mxu0 %v1867
      %1891 = vmatmul.bf16.gmra.mxu0 %v1827
      %v1892 = vpop.f32.mrf.mxu0
      %v1893 = vadd.f32 0.0, %v1892
      %v1894 = vpop.f32.mrf.mxu0
      %v1895 = vadd.f32 0.0, %v1894
      %1896 = vmatmul.bf16.gmra.mxu0 %v1828
      %v1897 = vpop.f32.mrf.mxu0
      %v1898 = vadd.f32 0.0, %v1897
      %v1899 = vpop.f32.mrf.mxu0
      %v1900 = vadd.f32 0.0, %v1899
      %1901 = vmatmul.bf16.gmra.mxu0 %v1829
      %v1902 = vpop.f32.mrf.mxu0
      %v1903 = vadd.f32 0.0, %v1902
      %v1904 = vpop.f32.mrf.mxu0
      %v1905 = vadd.f32 0.0, %v1904
      %1906 = vmatmul.bf16.gmra.mxu0 %v1830
      %v1907 = vpop.f32.mrf.mxu0
      %v1908 = vadd.f32 0.0, %v1907
      %v1909 = vpop.f32.mrf.mxu0
      %v1910 = vadd.f32 0.0, %v1909
      %1911 = vdwg.mxu0
      %v1912 = vadd.f32 %v1770, %v1893
      %v1913 = vadd.f32 %v1771, %v1895
      %v1914 = vadd.f32 %v1772, %v1898
      %v1915 = vadd.f32 %v1773, %v1900
      %v1916 = vadd.f32 %v1774, %v1903
      %v1917 = vadd.f32 %v1775, %v1905
      %v1918 = vadd.f32 %v1776, %v1908
      %v1919 = vadd.f32 %v1777, %v1910
      %v1920 = vld [vmem:[%s1360 + $0x1] sm:$0xff]
      %v1921 = vld [vmem:[%s1360 + $0x11] sm:$0xff]
      %v1922 = vld [vmem:[%s1360 + $0x21] sm:$0xff]
      %v1923 = vld [vmem:[%s1360 + $0x31] sm:$0xff]
      %v1924 = vld [vmem:[%s1360 + $0x41] sm:$0xff]
      %v1925 = vld [vmem:[%s1360 + $0x51] sm:$0xff]
      %v1926 = vld [vmem:[%s1360 + $0x61] sm:$0xff]
      %v1927 = vld [vmem:[%s1360 + $0x71] sm:$0xff]
      %v1928 = vpack.c.bf16 %v1920, %v1920
      %v1929 = vpack.c.bf16 %v1921, %v1921
      %v1930 = vpack.c.bf16 %v1922, %v1922
      %v1931 = vpack.c.bf16 %v1923, %v1923
      %v1932 = vpack.c.bf16 %v1924, %v1924
      %v1933 = vpack.c.bf16 %v1925, %v1925
      %v1934 = vpack.c.bf16 %v1926, %v1926
      %v1935 = vpack.c.bf16 %v1927, %v1927
      %s1936 = scalar_lea.vmem %s3, 256
      %v1937 = vld [vmem:[%s1936] sm:$0xf]
      %v1938 = vld [vmem:[%s1936 + $0x4] sm:$0xf]
      %v1939 = vld [vmem:[%s1936 + $0x8] sm:$0xf]
      %v1940 = vld [vmem:[%s1936 + $0xc] sm:$0xf]
      %v1941 = vld [vmem:[%s1936 + $0x10] sm:$0xf]
      %v1942 = vld [vmem:[%s1936 + $0x14] sm:$0xf]
      %v1943 = vld [vmem:[%s1936 + $0x18] sm:$0xf]
      %v1944 = vld [vmem:[%s1936 + $0x1c] sm:$0xf]
      %v1945 = vld [vmem:[%s1936 + $0x20] sm:$0xf]
      %v1946 = vld [vmem:[%s1936 + $0x24] sm:$0xf]
      %v1947 = vld [vmem:[%s1936 + $0x28] sm:$0xf]
      %v1948 = vld [vmem:[%s1936 + $0x2c] sm:$0xf]
      %v1949 = vld [vmem:[%s1936 + $0x30] sm:$0xf]
      %v1950 = vld [vmem:[%s1936 + $0x34] sm:$0xf]
      %v1951 = vld [vmem:[%s1936 + $0x38] sm:$0xf]
      %v1952 = vld [vmem:[%s1936 + $0x3c] sm:$0xf]
      %v1961 = vunpack.c.l.b16 %v1928
      %v1962 = vunpack.c.l.b16 %v1929
      %v1963 = vunpack.c.l.b16 %v1930
      %v1964 = vunpack.c.l.b16 %v1931
      %v1965 = vunpack.c.l.b16 %v1932
      %v1966 = vunpack.c.l.b16 %v1933
      %v1967 = vunpack.c.l.b16 %v1934
      %v1968 = vunpack.c.l.b16 %v1935
      %v1969 = vpack.c.b16 %v1962, %v1961
      %v1970 = vpack.c.b16 %v1964, %v1963
      %v1971 = vpack.c.b16 %v1966, %v1965
      %v1972 = vpack.c.b16 %v1968, %v1967
      %v1993 = vunpack.c.l.b16 %v1937
      %v1994 = vunpack.c.l.b16 %v1938
      %v1995 = vunpack.c.l.b16 %v1939
      %v1996 = vunpack.c.l.b16 %v1940
      %v1997 = vunpack.c.l.b16 %v1941
      %v1998 = vunpack.c.l.b16 %v1942
      %v1999 = vunpack.c.l.b16 %v1943
      %v2000 = vunpack.c.l.b16 %v1944
      %v2001 = vunpack.c.l.b16 %v1945
      %v2002 = vunpack.c.l.b16 %v1946
      %v2003 = vunpack.c.l.b16 %v1947
      %v2004 = vunpack.c.l.b16 %v1948
      %v2005 = vunpack.c.l.b16 %v1949
      %v2006 = vunpack.c.l.b16 %v1950
      %v2007 = vunpack.c.l.b16 %v1951
      %v2008 = vunpack.c.l.b16 %v1952
      %v2009 = vpack.c.b16 %v1994, %v1993
      %v2010 = vpack.c.b16 %v1996, %v1995
      %v2011 = vpack.c.b16 %v1998, %v1997
      %v2012 = vpack.c.b16 %v2000, %v1999
      %v2013 = vpack.c.b16 %v2002, %v2001
      %v2014 = vpack.c.b16 %v2004, %v2003
      %v2015 = vpack.c.b16 %v2006, %v2005
      %v2016 = vpack.c.b16 %v2008, %v2007
      %2025 = vmatpush.bf16.msra.mxu0 %v2016
      %2026 = vmatpush.bf16.msra.mxu0 %v2015
      %2027 = vmatpush.bf16.msra.mxu0 %v2014
      %2028 = vmatpush.bf16.msra.mxu0 %v2013
      %2029 = vmatpush.bf16.msra.mxu0 %v2012
      %2030 = vmatpush.bf16.msra.mxu0 %v2011
      %2031 = vmatpush.bf16.msra.mxu0 %v2010
      %2032 = vmatpush.bf16.msra.mxu0 %v2009
      %2033 = vmatmul.bf16.gmra.mxu0 %v1969
      %v2034 = vpop.f32.mrf.mxu0
      %v2035 = vadd.f32 0.0, %v2034
      %v2036 = vpop.f32.mrf.mxu0
      %v2037 = vadd.f32 0.0, %v2036
      %2038 = vmatmul.bf16.gmra.mxu0 %v1970
      %v2039 = vpop.f32.mrf.mxu0
      %v2040 = vadd.f32 0.0, %v2039
      %v2041 = vpop.f32.mrf.mxu0
      %v2042 = vadd.f32 0.0, %v2041
      %2043 = vmatmul.bf16.gmra.mxu0 %v1971
      %v2044 = vpop.f32.mrf.mxu0
      %v2045 = vadd.f32 0.0, %v2044
      %v2046 = vpop.f32.mrf.mxu0
      %v2047 = vadd.f32 0.0, %v2046
      %2048 = vmatmul.bf16.gmra.mxu0 %v1972
      %v2049 = vpop.f32.mrf.mxu0
      %v2050 = vadd.f32 0.0, %v2049
      %v2051 = vpop.f32.mrf.mxu0
      %v2052 = vadd.f32 0.0, %v2051
      %2053 = vdwg.mxu0
      %v2054 = vadd.f32 %v1912, %v2035
      %v2055 = vadd.f32 %v1913, %v2037
      %v2056 = vadd.f32 %v1914, %v2040
      %v2057 = vadd.f32 %v1915, %v2042
      %v2058 = vadd.f32 %v1916, %v2045
      %v2059 = vadd.f32 %v1917, %v2047
      %v2060 = vadd.f32 %v1918, %v2050
      %v2061 = vadd.f32 %v1919, %v2052
      %v2062 = vld [vmem:[%s1360 + $0x2] sm:$0xff]
      %v2063 = vld [vmem:[%s1360 + $0x12] sm:$0xff]
      %v2064 = vld [vmem:[%s1360 + $0x22] sm:$0xff]
      %v2065 = vld [vmem:[%s1360 + $0x32] sm:$0xff]
      %v2066 = vld [vmem:[%s1360 + $0x42] sm:$0xff]
      %v2067 = vld [vmem:[%s1360 + $0x52] sm:$0xff]
      %v2068 = vld [vmem:[%s1360 + $0x62] sm:$0xff]
      %v2069 = vld [vmem:[%s1360 + $0x72] sm:$0xff]
      %v2070 = vpack.c.bf16 %v2062, %v2062
      %v2071 = vpack.c.bf16 %v2063, %v2063
      %v2072 = vpack.c.bf16 %v2064, %v2064
      %v2073 = vpack.c.bf16 %v2065, %v2065
      %v2074 = vpack.c.bf16 %v2066, %v2066
      %v2075 = vpack.c.bf16 %v2067, %v2067
      %v2076 = vpack.c.bf16 %v2068, %v2068
      %v2077 = vpack.c.bf16 %v2069, %v2069
      %s2078 = scalar_lea.vmem %s3, 320
      %v2079 = vld [vmem:[%s2078] sm:$0xf]
      %v2080 = vld [vmem:[%s2078 + $0x4] sm:$0xf]
      %v2081 = vld [vmem:[%s2078 + $0x8] sm:$0xf]
      %v2082 = vld [vmem:[%s2078 + $0xc] sm:$0xf]
      %v2083 = vld [vmem:[%s2078 + $0x10] sm:$0xf]
      %v2084 = vld [vmem:[%s2078 + $0x14] sm:$0xf]
      %v2085 = vld [vmem:[%s2078 + $0x18] sm:$0xf]
      %v2086 = vld [vmem:[%s2078 + $0x1c] sm:$0xf]
      %v2087 = vld [vmem:[%s2078 + $0x20] sm:$0xf]
      %v2088 = vld [vmem:[%s2078 + $0x24] sm:$0xf]
      %v2089 = vld [vmem:[%s2078 + $0x28] sm:$0xf]
      %v2090 = vld [vmem:[%s2078 + $0x2c] sm:$0xf]
      %v2091 = vld [vmem:[%s2078 + $0x30] sm:$0xf]
      %v2092 = vld [vmem:[%s2078 + $0x34] sm:$0xf]
      %v2093 = vld [vmem:[%s2078 + $0x38] sm:$0xf]
      %v2094 = vld [vmem:[%s2078 + $0x3c] sm:$0xf]
      %v2103 = vunpack.c.l.b16 %v2070
      %v2104 = vunpack.c.l.b16 %v2071
      %v2105 = vunpack.c.l.b16 %v2072
      %v2106 = vunpack.c.l.b16 %v2073
      %v2107 = vunpack.c.l.b16 %v2074
      %v2108 = vunpack.c.l.b16 %v2075
      %v2109 = vunpack.c.l.b16 %v2076
      %v2110 = vunpack.c.l.b16 %v2077
      %v2111 = vpack.c.b16 %v2104, %v2103
      %v2112 = vpack.c.b16 %v2106, %v2105
      %v2113 = vpack.c.b16 %v2108, %v2107
      %v2114 = vpack.c.b16 %v2110, %v2109
      %v2135 = vunpack.c.l.b16 %v2079
      %v2136 = vunpack.c.l.b16 %v2080
      %v2137 = vunpack.c.l.b16 %v2081
      %v2138 = vunpack.c.l.b16 %v2082
      %v2139 = vunpack.c.l.b16 %v2083
      %v2140 = vunpack.c.l.b16 %v2084
      %v2141 = vunpack.c.l.b16 %v2085
      %v2142 = vunpack.c.l.b16 %v2086
      %v2143 = vunpack.c.l.b16 %v2087
      %v2144 = vunpack.c.l.b16 %v2088
      %v2145 = vunpack.c.l.b16 %v2089
      %v2146 = vunpack.c.l.b16 %v2090
      %v2147 = vunpack.c.l.b16 %v2091
      %v2148 = vunpack.c.l.b16 %v2092
      %v2149 = vunpack.c.l.b16 %v2093
      %v2150 = vunpack.c.l.b16 %v2094
      %v2151 = vpack.c.b16 %v2136, %v2135
      %v2152 = vpack.c.b16 %v2138, %v2137
      %v2153 = vpack.c.b16 %v2140, %v2139
      %v2154 = vpack.c.b16 %v2142, %v2141
      %v2155 = vpack.c.b16 %v2144, %v2143
      %v2156 = vpack.c.b16 %v2146, %v2145
      %v2157 = vpack.c.b16 %v2148, %v2147
      %v2158 = vpack.c.b16 %v2150, %v2149
      %2167 = vmatpush.bf16.msra.mxu0 %v2158
      %2168 = vmatpush.bf16.msra.mxu0 %v2157
      %2169 = vmatpush.bf16.msra.mxu0 %v2156
      %2170 = vmatpush.bf16.msra.mxu0 %v2155
      %2171 = vmatpush.bf16.msra.mxu0 %v2154
      %2172 = vmatpush.bf16.msra.mxu0 %v2153
      %2173 = vmatpush.bf16.msra.mxu0 %v2152
      %2174 = vmatpush.bf16.msra.mxu0 %v2151
      %2175 = vmatmul.bf16.gmra.mxu0 %v2111
      %v2176 = vpop.f32.mrf.mxu0
      %v2177 = vadd.f32 0.0, %v2176
      %v2178 = vpop.f32.mrf.mxu0
      %v2179 = vadd.f32 0.0, %v2178
      %2180 = vmatmul.bf16.gmra.mxu0 %v2112
      %v2181 = vpop.f32.mrf.mxu0
      %v2182 = vadd.f32 0.0, %v2181
      %v2183 = vpop.f32.mrf.mxu0
      %v2184 = vadd.f32 0.0, %v2183
      %2185 = vmatmul.bf16.gmra.mxu0 %v2113
      %v2186 = vpop.f32.mrf.mxu0
      %v2187 = vadd.f32 0.0, %v2186
      %v2188 = vpop.f32.mrf.mxu0
      %v2189 = vadd.f32 0.0, %v2188
      %2190 = vmatmul.bf16.gmra.mxu0 %v2114
      %v2191 = vpop.f32.mrf.mxu0
      %v2192 = vadd.f32 0.0, %v2191
      %v2193 = vpop.f32.mrf.mxu0
      %v2194 = vadd.f32 0.0, %v2193
      %2195 = vdwg.mxu0
      %v2196 = vadd.f32 %v2054, %v2177
      %v2197 = vadd.f32 %v2055, %v2179
      %v2198 = vadd.f32 %v2056, %v2182
      %v2199 = vadd.f32 %v2057, %v2184
      %v2200 = vadd.f32 %v2058, %v2187
      %v2201 = vadd.f32 %v2059, %v2189
      %v2202 = vadd.f32 %v2060, %v2192
      %v2203 = vadd.f32 %v2061, %v2194
      %s2204 = scalar_lea.vmem [#allocation2], 32
      %v2205 = vld [vmem:[%s2204] sm:$0xff]
      %v2206 = vld [vmem:[%s2204 + $0x10] sm:$0xff]
      %v2207 = vld [vmem:[%s2204 + $0x20] sm:$0xff]
      %v2208 = vld [vmem:[%s2204 + $0x30] sm:$0xff]
      %v2209 = vld [vmem:[%s2204 + $0x40] sm:$0xff]
      %v2210 = vld [vmem:[%s2204 + $0x50] sm:$0xff]
      %v2211 = vld [vmem:[%s2204 + $0x60] sm:$0xff]
      %v2212 = vld [vmem:[%s2204 + $0x70] sm:$0xff]
      %v2213 = vpack.c.bf16 %v2205, %v2205
      %v2214 = vpack.c.bf16 %v2206, %v2206
      %v2215 = vpack.c.bf16 %v2207, %v2207
      %v2216 = vpack.c.bf16 %v2208, %v2208
      %v2217 = vpack.c.bf16 %v2209, %v2209
      %v2218 = vpack.c.bf16 %v2210, %v2210
      %v2219 = vpack.c.bf16 %v2211, %v2211
      %v2220 = vpack.c.bf16 %v2212, %v2212
      %s2221 = scalar_lea.vmem %s3, 384
      %v2222 = vld [vmem:[%s2221] sm:$0xf]
      %v2223 = vld [vmem:[%s2221 + $0x4] sm:$0xf]
      %v2224 = vld [vmem:[%s2221 + $0x8] sm:$0xf]
      %v2225 = vld [vmem:[%s2221 + $0xc] sm:$0xf]
      %v2226 = vld [vmem:[%s2221 + $0x10] sm:$0xf]
      %v2227 = vld [vmem:[%s2221 + $0x14] sm:$0xf]
      %v2228 = vld [vmem:[%s2221 + $0x18] sm:$0xf]
      %v2229 = vld [vmem:[%s2221 + $0x1c] sm:$0xf]
      %v2230 = vld [vmem:[%s2221 + $0x20] sm:$0xf]
      %v2231 = vld [vmem:[%s2221 + $0x24] sm:$0xf]
      %v2232 = vld [vmem:[%s2221 + $0x28] sm:$0xf]
      %v2233 = vld [vmem:[%s2221 + $0x2c] sm:$0xf]
      %v2234 = vld [vmem:[%s2221 + $0x30] sm:$0xf]
      %v2235 = vld [vmem:[%s2221 + $0x34] sm:$0xf]
      %v2236 = vld [vmem:[%s2221 + $0x38] sm:$0xf]
      %v2237 = vld [vmem:[%s2221 + $0x3c] sm:$0xf]
      %v2246 = vunpack.c.l.b16 %v2213
      %v2247 = vunpack.c.l.b16 %v2214
      %v2248 = vunpack.c.l.b16 %v2215
      %v2249 = vunpack.c.l.b16 %v2216
      %v2250 = vunpack.c.l.b16 %v2217
      %v2251 = vunpack.c.l.b16 %v2218
      %v2252 = vunpack.c.l.b16 %v2219
      %v2253 = vunpack.c.l.b16 %v2220
      %v2254 = vpack.c.b16 %v2247, %v2246
      %v2255 = vpack.c.b16 %v2249, %v2248
      %v2256 = vpack.c.b16 %v2251, %v2250
      %v2257 = vpack.c.b16 %v2253, %v2252
      %v2278 = vunpack.c.l.b16 %v2222
      %v2279 = vunpack.c.l.b16 %v2223
      %v2280 = vunpack.c.l.b16 %v2224
      %v2281 = vunpack.c.l.b16 %v2225
      %v2282 = vunpack.c.l.b16 %v2226
      %v2283 = vunpack.c.l.b16 %v2227
      %v2284 = vunpack.c.l.b16 %v2228
      %v2285 = vunpack.c.l.b16 %v2229
      %v2286 = vunpack.c.l.b16 %v2230
      %v2287 = vunpack.c.l.b16 %v2231
      %v2288 = vunpack.c.l.b16 %v2232
      %v2289 = vunpack.c.l.b16 %v2233
      %v2290 = vunpack.c.l.b16 %v2234
      %v2291 = vunpack.c.l.b16 %v2235
      %v2292 = vunpack.c.l.b16 %v2236
      %v2293 = vunpack.c.l.b16 %v2237
      %v2294 = vpack.c.b16 %v2279, %v2278
      %v2295 = vpack.c.b16 %v2281, %v2280
      %v2296 = vpack.c.b16 %v2283, %v2282
      %v2297 = vpack.c.b16 %v2285, %v2284
      %v2298 = vpack.c.b16 %v2287, %v2286
      %v2299 = vpack.c.b16 %v2289, %v2288
      %v2300 = vpack.c.b16 %v2291, %v2290
      %v2301 = vpack.c.b16 %v2293, %v2292
      %2310 = vmatpush.bf16.msra.mxu0 %v2301
      %2311 = vmatpush.bf16.msra.mxu0 %v2300
      %2312 = vmatpush.bf16.msra.mxu0 %v2299
      %2313 = vmatpush.bf16.msra.mxu0 %v2298
      %2314 = vmatpush.bf16.msra.mxu0 %v2297
      %2315 = vmatpush.bf16.msra.mxu0 %v2296
      %2316 = vmatpush.bf16.msra.mxu0 %v2295
      %2317 = vmatpush.bf16.msra.mxu0 %v2294
      %2318 = vmatmul.bf16.gmra.mxu0 %v2254
      %v2319 = vpop.f32.mrf.mxu0
      %v2320 = vadd.f32 0.0, %v2319
      %v2321 = vpop.f32.mrf.mxu0
      %v2322 = vadd.f32 0.0, %v2321
      %2323 = vmatmul.bf16.gmra.mxu0 %v2255
      %v2324 = vpop.f32.mrf.mxu0
      %v2325 = vadd.f32 0.0, %v2324
      %v2326 = vpop.f32.mrf.mxu0
      %v2327 = vadd.f32 0.0, %v2326
      %2328 = vmatmul.bf16.gmra.mxu0 %v2256
      %v2329 = vpop.f32.mrf.mxu0
      %v2330 = vadd.f32 0.0, %v2329
      %v2331 = vpop.f32.mrf.mxu0
      %v2332 = vadd.f32 0.0, %v2331
      %2333 = vmatmul.bf16.gmra.mxu0 %v2257
      %v2334 = vpop.f32.mrf.mxu0
      %v2335 = vadd.f32 0.0, %v2334
      %v2336 = vpop.f32.mrf.mxu0
      %v2337 = vadd.f32 0.0, %v2336
      %2338 = vdwg.mxu0
      %v2339 = vadd.f32 %v2196, %v2320
      %v2340 = vadd.f32 %v2197, %v2322
      %v2341 = vadd.f32 %v2198, %v2325
      %v2342 = vadd.f32 %v2199, %v2327
      %v2343 = vadd.f32 %v2200, %v2330
      %v2344 = vadd.f32 %v2201, %v2332
      %v2345 = vadd.f32 %v2202, %v2335
      %v2346 = vadd.f32 %v2203, %v2337
      %v2347 = vld [vmem:[%s2204 + $0x1] sm:$0xff]
      %v2348 = vld [vmem:[%s2204 + $0x11] sm:$0xff]
      %v2349 = vld [vmem:[%s2204 + $0x21] sm:$0xff]
      %v2350 = vld [vmem:[%s2204 + $0x31] sm:$0xff]
      %v2351 = vld [vmem:[%s2204 + $0x41] sm:$0xff]
      %v2352 = vld [vmem:[%s2204 + $0x51] sm:$0xff]
      %v2353 = vld [vmem:[%s2204 + $0x61] sm:$0xff]
      %v2354 = vld [vmem:[%s2204 + $0x71] sm:$0xff]
      %v2355 = vpack.c.bf16 %v2347, %v2347
      %v2356 = vpack.c.bf16 %v2348, %v2348
      %v2357 = vpack.c.bf16 %v2349, %v2349
      %v2358 = vpack.c.bf16 %v2350, %v2350
      %v2359 = vpack.c.bf16 %v2351, %v2351
      %v2360 = vpack.c.bf16 %v2352, %v2352
      %v2361 = vpack.c.bf16 %v2353, %v2353
      %v2362 = vpack.c.bf16 %v2354, %v2354
      %s2363 = scalar_lea.vmem %s3, 448
      %v2364 = vld [vmem:[%s2363] sm:$0xf]
      %v2365 = vld [vmem:[%s2363 + $0x4] sm:$0xf]
      %v2366 = vld [vmem:[%s2363 + $0x8] sm:$0xf]
      %v2367 = vld [vmem:[%s2363 + $0xc] sm:$0xf]
      %v2368 = vld [vmem:[%s2363 + $0x10] sm:$0xf]
      %v2369 = vld [vmem:[%s2363 + $0x14] sm:$0xf]
      %v2370 = vld [vmem:[%s2363 + $0x18] sm:$0xf]
      %v2371 = vld [vmem:[%s2363 + $0x1c] sm:$0xf]
      %v2372 = vld [vmem:[%s2363 + $0x20] sm:$0xf]
      %v2373 = vld [vmem:[%s2363 + $0x24] sm:$0xf]
      %v2374 = vld [vmem:[%s2363 + $0x28] sm:$0xf]
      %v2375 = vld [vmem:[%s2363 + $0x2c] sm:$0xf]
      %v2376 = vld [vmem:[%s2363 + $0x30] sm:$0xf]
      %v2377 = vld [vmem:[%s2363 + $0x34] sm:$0xf]
      %v2378 = vld [vmem:[%s2363 + $0x38] sm:$0xf]
      %v2379 = vld [vmem:[%s2363 + $0x3c] sm:$0xf]
      %v2388 = vunpack.c.l.b16 %v2355
      %v2389 = vunpack.c.l.b16 %v2356
      %v2390 = vunpack.c.l.b16 %v2357
      %v2391 = vunpack.c.l.b16 %v2358
      %v2392 = vunpack.c.l.b16 %v2359
      %v2393 = vunpack.c.l.b16 %v2360
      %v2394 = vunpack.c.l.b16 %v2361
      %v2395 = vunpack.c.l.b16 %v2362
      %v2396 = vpack.c.b16 %v2389, %v2388
      %v2397 = vpack.c.b16 %v2391, %v2390
      %v2398 = vpack.c.b16 %v2393, %v2392
      %v2399 = vpack.c.b16 %v2395, %v2394
      %v2420 = vunpack.c.l.b16 %v2364
      %v2421 = vunpack.c.l.b16 %v2365
      %v2422 = vunpack.c.l.b16 %v2366
      %v2423 = vunpack.c.l.b16 %v2367
      %v2424 = vunpack.c.l.b16 %v2368
      %v2425 = vunpack.c.l.b16 %v2369
      %v2426 = vunpack.c.l.b16 %v2370
      %v2427 = vunpack.c.l.b16 %v2371
      %v2428 = vunpack.c.l.b16 %v2372
      %v2429 = vunpack.c.l.b16 %v2373
      %v2430 = vunpack.c.l.b16 %v2374
      %v2431 = vunpack.c.l.b16 %v2375
      %v2432 = vunpack.c.l.b16 %v2376
      %v2433 = vunpack.c.l.b16 %v2377
      %v2434 = vunpack.c.l.b16 %v2378
      %v2435 = vunpack.c.l.b16 %v2379
      %v2436 = vpack.c.b16 %v2421, %v2420
      %v2437 = vpack.c.b16 %v2423, %v2422
      %v2438 = vpack.c.b16 %v2425, %v2424
      %v2439 = vpack.c.b16 %v2427, %v2426
      %v2440 = vpack.c.b16 %v2429, %v2428
      %v2441 = vpack.c.b16 %v2431, %v2430
      %v2442 = vpack.c.b16 %v2433, %v2432
      %v2443 = vpack.c.b16 %v2435, %v2434
      %2452 = vmatpush.bf16.msra.mxu0 %v2443
      %2453 = vmatpush.bf16.msra.mxu0 %v2442
      %2454 = vmatpush.bf16.msra.mxu0 %v2441
      %2455 = vmatpush.bf16.msra.mxu0 %v2440
      %2456 = vmatpush.bf16.msra.mxu0 %v2439
      %2457 = vmatpush.bf16.msra.mxu0 %v2438
      %2458 = vmatpush.bf16.msra.mxu0 %v2437
      %2459 = vmatpush.bf16.msra.mxu0 %v2436
      %2460 = vmatmul.bf16.gmra.mxu0 %v2396
      %v2461 = vpop.f32.mrf.mxu0
      %v2462 = vadd.f32 0.0, %v2461
      %v2463 = vpop.f32.mrf.mxu0
      %v2464 = vadd.f32 0.0, %v2463
      %2465 = vmatmul.bf16.gmra.mxu0 %v2397
      %v2466 = vpop.f32.mrf.mxu0
      %v2467 = vadd.f32 0.0, %v2466
      %v2468 = vpop.f32.mrf.mxu0
      %v2469 = vadd.f32 0.0, %v2468
      %2470 = vmatmul.bf16.gmra.mxu0 %v2398
      %v2471 = vpop.f32.mrf.mxu0
      %v2472 = vadd.f32 0.0, %v2471
      %v2473 = vpop.f32.mrf.mxu0
      %v2474 = vadd.f32 0.0, %v2473
      %2475 = vmatmul.bf16.gmra.mxu0 %v2399
      %v2476 = vpop.f32.mrf.mxu0
      %v2477 = vadd.f32 0.0, %v2476
      %v2478 = vpop.f32.mrf.mxu0
      %v2479 = vadd.f32 0.0, %v2478
      %2480 = vdwg.mxu0
      %v2481 = vadd.f32 %v2339, %v2462
      %v2482 = vadd.f32 %v2340, %v2464
      %v2483 = vadd.f32 %v2341, %v2467
      %v2484 = vadd.f32 %v2342, %v2469
      %v2485 = vadd.f32 %v2343, %v2472
      %v2486 = vadd.f32 %v2344, %v2474
      %v2487 = vadd.f32 %v2345, %v2477
      %v2488 = vadd.f32 %v2346, %v2479
      %v2489 = vld [vmem:[%s2204 + $0x2] sm:$0xff]
      %v2490 = vld [vmem:[%s2204 + $0x12] sm:$0xff]
      %v2491 = vld [vmem:[%s2204 + $0x22] sm:$0xff]
      %v2492 = vld [vmem:[%s2204 + $0x32] sm:$0xff]
      %v2493 = vld [vmem:[%s2204 + $0x42] sm:$0xff]
      %v2494 = vld [vmem:[%s2204 + $0x52] sm:$0xff]
      %v2495 = vld [vmem:[%s2204 + $0x62] sm:$0xff]
      %v2496 = vld [vmem:[%s2204 + $0x72] sm:$0xff]
      %v2497 = vpack.c.bf16 %v2489, %v2489
      %v2498 = vpack.c.bf16 %v2490, %v2490
      %v2499 = vpack.c.bf16 %v2491, %v2491
      %v2500 = vpack.c.bf16 %v2492, %v2492
      %v2501 = vpack.c.bf16 %v2493, %v2493
      %v2502 = vpack.c.bf16 %v2494, %v2494
      %v2503 = vpack.c.bf16 %v2495, %v2495
      %v2504 = vpack.c.bf16 %v2496, %v2496
      %s2505 = scalar_lea.vmem %s3, 512
      %v2506 = vld [vmem:[%s2505] sm:$0xf]
      %v2507 = vld [vmem:[%s2505 + $0x4] sm:$0xf]
      %v2508 = vld [vmem:[%s2505 + $0x8] sm:$0xf]
      %v2509 = vld [vmem:[%s2505 + $0xc] sm:$0xf]
      %v2510 = vld [vmem:[%s2505 + $0x10] sm:$0xf]
      %v2511 = vld [vmem:[%s2505 + $0x14] sm:$0xf]
      %v2512 = vld [vmem:[%s2505 + $0x18] sm:$0xf]
      %v2513 = vld [vmem:[%s2505 + $0x1c] sm:$0xf]
      %v2514 = vld [vmem:[%s2505 + $0x20] sm:$0xf]
      %v2515 = vld [vmem:[%s2505 + $0x24] sm:$0xf]
      %v2516 = vld [vmem:[%s2505 + $0x28] sm:$0xf]
      %v2517 = vld [vmem:[%s2505 + $0x2c] sm:$0xf]
      %v2518 = vld [vmem:[%s2505 + $0x30] sm:$0xf]
      %v2519 = vld [vmem:[%s2505 + $0x34] sm:$0xf]
      %v2520 = vld [vmem:[%s2505 + $0x38] sm:$0xf]
      %v2521 = vld [vmem:[%s2505 + $0x3c] sm:$0xf]
      %v2530 = vunpack.c.l.b16 %v2497
      %v2531 = vunpack.c.l.b16 %v2498
      %v2532 = vunpack.c.l.b16 %v2499
      %v2533 = vunpack.c.l.b16 %v2500
      %v2534 = vunpack.c.l.b16 %v2501
      %v2535 = vunpack.c.l.b16 %v2502
      %v2536 = vunpack.c.l.b16 %v2503
      %v2537 = vunpack.c.l.b16 %v2504
      %v2538 = vpack.c.b16 %v2531, %v2530
      %v2539 = vpack.c.b16 %v2533, %v2532
      %v2540 = vpack.c.b16 %v2535, %v2534
      %v2541 = vpack.c.b16 %v2537, %v2536
      %v2562 = vunpack.c.l.b16 %v2506
      %v2563 = vunpack.c.l.b16 %v2507
      %v2564 = vunpack.c.l.b16 %v2508
      %v2565 = vunpack.c.l.b16 %v2509
      %v2566 = vunpack.c.l.b16 %v2510
      %v2567 = vunpack.c.l.b16 %v2511
      %v2568 = vunpack.c.l.b16 %v2512
      %v2569 = vunpack.c.l.b16 %v2513
      %v2570 = vunpack.c.l.b16 %v2514
      %v2571 = vunpack.c.l.b16 %v2515
      %v2572 = vunpack.c.l.b16 %v2516
      %v2573 = vunpack.c.l.b16 %v2517
      %v2574 = vunpack.c.l.b16 %v2518
      %v2575 = vunpack.c.l.b16 %v2519
      %v2576 = vunpack.c.l.b16 %v2520
      %v2577 = vunpack.c.l.b16 %v2521
      %v2578 = vpack.c.b16 %v2563, %v2562
      %v2579 = vpack.c.b16 %v2565, %v2564
      %v2580 = vpack.c.b16 %v2567, %v2566
      %v2581 = vpack.c.b16 %v2569, %v2568
      %v2582 = vpack.c.b16 %v2571, %v2570
      %v2583 = vpack.c.b16 %v2573, %v2572
      %v2584 = vpack.c.b16 %v2575, %v2574
      %v2585 = vpack.c.b16 %v2577, %v2576
      %2594 = vmatpush.bf16.msra.mxu0 %v2585
      %2595 = vmatpush.bf16.msra.mxu0 %v2584
      %2596 = vmatpush.bf16.msra.mxu0 %v2583
      %2597 = vmatpush.bf16.msra.mxu0 %v2582
      %2598 = vmatpush.bf16.msra.mxu0 %v2581
      %2599 = vmatpush.bf16.msra.mxu0 %v2580
      %2600 = vmatpush.bf16.msra.mxu0 %v2579
      %2601 = vmatpush.bf16.msra.mxu0 %v2578
      %2602 = vmatmul.bf16.gmra.mxu0 %v2538
      %v2603 = vpop.f32.mrf.mxu0
      %v2604 = vadd.f32 0.0, %v2603
      %v2605 = vpop.f32.mrf.mxu0
      %v2606 = vadd.f32 0.0, %v2605
      %2607 = vmatmul.bf16.gmra.mxu0 %v2539
      %v2608 = vpop.f32.mrf.mxu0
      %v2609 = vadd.f32 0.0, %v2608
      %v2610 = vpop.f32.mrf.mxu0
      %v2611 = vadd.f32 0.0, %v2610
      %2612 = vmatmul.bf16.gmra.mxu0 %v2540
      %v2613 = vpop.f32.mrf.mxu0
      %v2614 = vadd.f32 0.0, %v2613
      %v2615 = vpop.f32.mrf.mxu0
      %v2616 = vadd.f32 0.0, %v2615
      %2617 = vmatmul.bf16.gmra.mxu0 %v2541
      %v2618 = vpop.f32.mrf.mxu0
      %v2619 = vadd.f32 0.0, %v2618
      %v2620 = vpop.f32.mrf.mxu0
      %v2621 = vadd.f32 0.0, %v2620
      %2622 = vdwg.mxu0
      %v2623 = vadd.f32 %v2481, %v2604
      %v2624 = vadd.f32 %v2482, %v2606
      %v2625 = vadd.f32 %v2483, %v2609
      %v2626 = vadd.f32 %v2484, %v2611
      %v2627 = vadd.f32 %v2485, %v2614
      %v2628 = vadd.f32 %v2486, %v2616
      %v2629 = vadd.f32 %v2487, %v2619
      %v2630 = vadd.f32 %v2488, %v2621
      %v2631 = vld [vmem:[%s683] sm:$0xf]
      %v2632 = vld [vmem:[%s683 + $0x8] sm:$0xf]
      %v2633 = vld [vmem:[%s683 + $0x10] sm:$0xf]
      %v2634 = vld [vmem:[%s683 + $0x18] sm:$0xf]
      %v2635 = vld [vmem:[%s683 + $0x20] sm:$0xf]
      %v2636 = vld [vmem:[%s683 + $0x28] sm:$0xf]
      %v2637 = vld [vmem:[%s683 + $0x30] sm:$0xf]
      %v2638 = vld [vmem:[%s683 + $0x38] sm:$0xf]
      %v2639 = vld [vmem:[%s4] sm:$0x3]
      %v2648 = vunpack.c.l.b16 %v2631
      %v2649 = vunpack.c.l.b16 %v2632
      %v2650 = vunpack.c.l.b16 %v2633
      %v2651 = vunpack.c.l.b16 %v2634
      %v2652 = vunpack.c.l.b16 %v2635
      %v2653 = vunpack.c.l.b16 %v2636
      %v2654 = vunpack.c.l.b16 %v2637
      %v2655 = vunpack.c.l.b16 %v2638
      %v2656 = vpack.c.b16 %v2649, %v2648
      %v2657 = vpack.c.b16 %v2651, %v2650
      %v2658 = vpack.c.b16 %v2653, %v2652
      %v2659 = vpack.c.b16 %v2655, %v2654
      %v2661 = vsel %vm293, %v2656, 0
      %v2664 = vsel %vm293, %v2657, 0
      %v2667 = vsel %vm293, %v2658, 0
      %v2670 = vsel %vm293, %v2659, 0
      %v2673 = vsel %vm306, %v2639, 0
      %2675 = vmatpush.bf16.msra.mxu0 0
      %2676 = vmatpush.bf16.msra.mxu0 0
      %2677 = vmatpush.bf16.msra.mxu0 0
      %2678 = vmatpush.bf16.msra.mxu0 0
      %2679 = vmatpush.bf16.msra.mxu0 0
      %2680 = vmatpush.bf16.msra.mxu0 0
      %2681 = vmatpush.bf16.msra.mxu0 0
      %2682 = vmatpush.bf16.msra.mxu0 %v2673
      %2683 = vmatmul.bf16.gmra.mxu0 %v2661
      %v2684 = vpop.f32.mrf.mxu0
      %v2685 = vadd.f32 0.0, %v2684
      %v2686 = vpop.f32.mrf.mxu0
      %v2687 = vadd.f32 0.0, %v2686
      %2688 = vmatmul.bf16.gmra.mxu0 %v2664
      %v2689 = vpop.f32.mrf.mxu0
      %v2690 = vadd.f32 0.0, %v2689
      %v2691 = vpop.f32.mrf.mxu0
      %v2692 = vadd.f32 0.0, %v2691
      %2693 = vmatmul.bf16.gmra.mxu0 %v2667
      %v2694 = vpop.f32.mrf.mxu0
      %v2695 = vadd.f32 0.0, %v2694
      %v2696 = vpop.f32.mrf.mxu0
      %v2697 = vadd.f32 0.0, %v2696
      %2698 = vmatmul.bf16.gmra.mxu0 %v2670
      %v2699 = vpop.f32.mrf.mxu0
      %v2700 = vadd.f32 0.0, %v2699
      %v2701 = vpop.f32.mrf.mxu0
      %v2702 = vadd.f32 0.0, %v2701
      %2703 = vdwg.mxu0
      %v2704 = vadd.f32 %v2623, %v2685
      %v2705 = vadd.f32 %v2624, %v2687
      %v2706 = vadd.f32 %v2625, %v2690
      %v2707 = vadd.f32 %v2626, %v2692
      %v2708 = vadd.f32 %v2627, %v2695
      %v2709 = vadd.f32 %v2628, %v2697
      %v2710 = vadd.f32 %v2629, %v2700
      %v2711 = vadd.f32 %v2630, %v2702
      %v2712 = vld [vmem:[%s5] sm:$0x1]
      %v2714 = vperm.slane %v2712, 0
      %v2716 = vadd.f32 %v2704, %v2714
      %v2717 = vadd.f32 %v2705, %v2714
      %v2718 = vadd.f32 %v2706, %v2714
      %v2719 = vadd.f32 %v2707, %v2714
      %v2720 = vadd.f32 %v2708, %v2714
      %v2721 = vadd.f32 %v2709, %v2714
      %v2722 = vadd.f32 %v2710, %v2714
      %v2723 = vadd.f32 %v2711, %v2714
      %v2724 = vmax.f32 %v2716, 0.0
      %v2725 = vmax.f32 %v2717, 0.0
      %v2726 = vmax.f32 %v2718, 0.0
      %v2727 = vmax.f32 %v2719, 0.0
      %v2728 = vmax.f32 %v2720, 0.0
      %v2729 = vmax.f32 %v2721, 0.0
      %v2730 = vmax.f32 %v2722, 0.0
      %v2731 = vmax.f32 %v2723, 0.0
      %2732 = vst [vmem:[%s251] sm:$0xff] %v2724
      %2733 = vst [vmem:[%s251 + $0x8] sm:$0xff] %v2725
      %2734 = vst [vmem:[%s251 + $0x10] sm:$0xff] %v2726
      %2735 = vst [vmem:[%s251 + $0x18] sm:$0xff] %v2727
      %2736 = vst [vmem:[%s251 + $0x20] sm:$0xff] %v2728
      %2737 = vst [vmem:[%s251 + $0x28] sm:$0xff] %v2729
      %2738 = vst [vmem:[%s251 + $0x30] sm:$0xff] %v2730
      %2739 = vst [vmem:[%s251 + $0x38] sm:$0xff] %v2731
      %p2740 = scmp.lt.s32.totalorder %s17, 1
      %s2741 = scalar_select %p2740, %s17, 1
      %s2742 = smul.addr %s2741, 8
      %s2743 = smul.addr %s2742, 8
      %s2744 = scalar_lea.vmem %s6, %s2743
      // Predicated region
      $region45: #{restnet_down_block.1} parent=43 // pred_check
        %p2745 = pneg %p166
      $region46: #{restnet_down_block.1} parent=43 // pred_check_branch
        %2747 = sbr.rel (%p2745) target = $region48
      $region47: #{restnet_down_block.1} parent=43 // pred_region
        _
      $region48: #{restnet_down_block.1} parent=43 // pred_fallthru
        _
    $region44: #{restnet_down_block.1} parent=5 // pred_fallthru
      _
    %p2748 = scmp.le.s32.totalorder 2, %s12
    // Predicated region
    $region49: #{restnet_down_block.1} parent=5 // pred_check
      %p2749 = pneg %p2748
    $region50: #{restnet_down_block.1} parent=5 // pred_check_branch
      %2751 = sbr.rel (%p2749) target = $region52
    $region51: #{restnet_down_block.1} parent=5 // pred_region
      %s2752 = ssub.s32 %s12, 2
      // Predicated region
      $region53: #{restnet_down_block.1} parent=51 // pred_check
        %p2753 = pneg %p172
      $region54: #{restnet_down_block.1} parent=51 // pred_check_branch
        %2755 = sbr.rel (%p2753) target = $region56
      $region55: #{restnet_down_block.1} parent=51 // pred_region
        %p2756 = scmp.lt.s32.totalorder %s18, 1
        %s2757 = scalar_select %p2756, %s18, 1
        %s2758 = smul.addr %s2757, 8
        %s2759 = smul.addr %s2758, 8
        %s2760 = scalar_lea.vmem %s6, %s2759
      $region56: #{restnet_down_block.1} parent=51 // pred_fallthru
        _
    $region52: #{restnet_down_block.1} parent=5 // pred_fallthru
      _
  $region6: #{restnet_down_block.1} parent=0 // loop_footer
    %s16 = sadd.s32 1, %s12
  $region7: #{restnet_down_block.1} parent=0 // loop_footer_branch
    %11 = sbr.rel target = $region3
  $region8: #{restnet_down_block.1} parent=0 // loop_exit
    _

</llo_original>
